<compile_context>
chip_gen: v7x
topology: tpu7x:2x2x1
jax: 0.10.0
libtpu: 0.0.40
codegen_flags: <defaults>
</compile_context>

<pallas_src>
import functools

import jax
import jax.numpy as jnp
from jax.experimental import pallas as pl
from jax.experimental.pallas import tpu as pltpu


def _round_up(x, m):
    return (x + m - 1) // m * m


def _pick_chunk(seq_len, max_chunk=32):
    """Largest divisor of seq_len that is <= max_chunk (time steps per grid iter)."""
    c = min(seq_len, max_chunk)
    while seq_len % c:
        c -= 1
    return c


# ----------------------------------------------------------------------------
# Kernel: one grid step == one chunk of `chunk` LSTM time steps.
# Gate order matches PyTorch nn.LSTM: [i, f, g, o], each gate padded to Hp lanes.
# ----------------------------------------------------------------------------
def _lstm_chunk_kernel(x_ref, w_ih_ref, w_hh_ref, b_ref, w_fc_ref, b_fc_ref,
                       out_ref, h_ref, c_ref, xg_ref, *, chunk, bp, hp):
    ci = pl.program_id(0)

    @pl.when(ci == 0)
    def _init():
        h_ref[...] = jnp.zeros_like(h_ref)
        c_ref[...] = jnp.zeros_like(c_ref)

    # (1) Hoisted input projection for the whole chunk: ONE MXU matmul over
    #     (chunk*Bp, I) x (I, 4*Hp); bias is folded in here, not per step.
    xg_ref[...] = (
        jnp.dot(x_ref[...], w_ih_ref[...], preferred_element_type=jnp.float32)
        + b_ref[...]
    )

    w_hh = w_hh_ref[...]   # resident (Hp, 4*Hp)

    # (2) Recurrence: only h @ W_hh remains inside the sequential loop.
    def step(t, carry):
        h, c = carry
        row = pl.multiple_of(t * bp, bp)
        gates = xg_ref[pl.ds(row, bp), :] + jnp.dot(
            h.astype(w_hh.dtype), w_hh, preferred_element_type=jnp.float32)
        # Hp is a multiple of 128 -> every gate slice is a lane-aligned tile.
        i_g = jax.nn.sigmoid(gates[:, 0 * hp:1 * hp])
        f_g = jax.nn.sigmoid(gates[:, 1 * hp:2 * hp])
        g_g = jnp.tanh(gates[:, 2 * hp:3 * hp])
        o_g = jax.nn.sigmoid(gates[:, 3 * hp:4 * hp])
        c_new = f_g * c + i_g * g_g
        h_new = o_g * jnp.tanh(c_new)
        return h_new, c_new

    h, c = jax.lax.fori_loop(0, chunk, step, (h_ref[...], c_ref[...]),
                             unroll=True)
    h_ref[...] = h
    c_ref[...] = c

    # (3) Final FC head on the last hidden state, fused into the last chunk.
    @pl.when(ci == pl.num_programs(0) - 1)
    def _finalize():
        out_ref[...] = (
            jnp.dot(h.astype(w_fc_ref.dtype), w_fc_ref[...],
                    preferred_element_type=jnp.float32)
            + b_fc_ref[...]
        )


# ----------------------------------------------------------------------------
# Wrapper (glue): parameter re-layout/padding, pallas_call, final view().
# ----------------------------------------------------------------------------
def lstm_nn_forward(x, params, *, max_chunk=32, compute_dtype=jnp.float32):
    """Forward pass equivalent to lstmNN.forward.

    x: (batch, seq, input_size) float32   (PyTorch batch_first layout)
    params: PyTorch-layout tensors:
        w_ih: (4H, I)  w_hh: (4H, H)  b_ih: (4H,)  b_hh: (4H,)
        w_fc: (O, H)   b_fc: (O,)
    returns: (batch * output_size, 1) float32
    """
    B, S, I = x.shape
    H = params["w_hh"].shape[1]
    O = params["w_fc"].shape[0]

    Bp = _round_up(B, 8)       # sublane-aligned batch
    Hp = _round_up(H, 128)     # lane-aligned hidden (per-gate tile)
    Op = _round_up(O, 128)     # lane-dense output slab
    T = _pick_chunk(S, max_chunk)
    n_chunks = S // T

    # ---- re-layout / pad parameters: gate-blocked, 128-lane aligned -------
    def gate_block_cols(w_t):          # (rows, 4H) -> (rows, 4*Hp)
        rows = w_t.shape[0]
        w4 = w_t.reshape(rows, 4, H)
        w4 = jnp.pad(w4, ((0, 0), (0, 0), (0, Hp - H)))
        return w4.reshape(rows, 4 * Hp)

    w_ih = gate_block_cols(jnp.transpose(params["w_ih"]).astype(jnp.float32))
    w_hh = gate_block_cols(jnp.transpose(params["w_hh"]).astype(jnp.float32))
    w_hh = jnp.pad(w_hh, ((0, Hp - H), (0, 0)))
    b = gate_block_cols(
        (params["b_ih"] + params["b_hh"]).reshape(1, 4 * H).astype(jnp.float32))
    w_fc = jnp.pad(jnp.transpose(params["w_fc"]).astype(jnp.float32),
                   ((0, Hp - H), (0, Op - O)))
    b_fc = jnp.pad(params["b_fc"].reshape(1, O).astype(jnp.float32),
                   ((0, 0), (0, Op - O)))

    # bf16 option for v6e/v7x (accumulation stays f32 inside the kernel).
    w_ih = w_ih.astype(compute_dtype)
    w_hh = w_hh.astype(compute_dtype)
    w_fc = w_fc.astype(compute_dtype)

    # ---- input: (B, S, I) -> (S, Bp, I) -> (S*Bp, I), batch padded --------
    x_sbi = jnp.transpose(x, (1, 0, 2)).astype(compute_dtype)
    x_sbi = jnp.pad(x_sbi, ((0, 0), (0, Bp - B), (0, 0)))
    x2d = x_sbi.reshape(S * Bp, I)

    kernel = functools.partial(_lstm_chunk_kernel, chunk=T, bp=Bp, hp=Hp)

    y = pl.pallas_call(
        kernel,
        out_shape=jax.ShapeDtypeStruct((Bp, Op), jnp.float32),
        grid_spec=pltpu.PrefetchScalarGridSpec(
            num_scalar_prefetch=0,
            grid=(n_chunks,),
            in_specs=[
                pl.BlockSpec((T * Bp, I), lambda c: (c, 0)),    # x chunk slab
                pl.BlockSpec((I, 4 * Hp), lambda c: (0, 0)),    # W_ih (resident)
                pl.BlockSpec((Hp, 4 * Hp), lambda c: (0, 0)),   # W_hh (resident)
                pl.BlockSpec((1, 4 * Hp), lambda c: (0, 0)),    # fused bias
                pl.BlockSpec((Hp, Op), lambda c: (0, 0)),       # W_fc
                pl.BlockSpec((1, Op), lambda c: (0, 0)),        # b_fc
            ],
            out_specs=pl.BlockSpec((Bp, Op), lambda c: (0, 0)),
            scratch_shapes=[
                pltpu.VMEM((Bp, Hp), jnp.float32),          # h carry
                pltpu.VMEM((Bp, Hp), jnp.float32),          # c carry
                pltpu.VMEM((T * Bp, 4 * Hp), jnp.float32),  # chunk input proj
            ],
        ),
        compiler_params=pltpu.CompilerParams(
            dimension_semantics=("arbitrary",),   # sequential recurrence
        ),
        # TODO(synk): for v7x, add a leading "parallel" batch-tile grid axis so
        # both TensorCores run independent batch slices.
    )(x2d, w_ih, w_hh, b, w_fc, b_fc)

    # PyTorch: fc(x[:, -1, :]).view(B * O, -1)
    return y[:B, :O].reshape(B * O, 1)


# ----------------------------------------------------------------------------
# Pure-JAX reference (sanity check against the kernel).
# ----------------------------------------------------------------------------
def lstm_nn_reference(x, params):
    B, S, I = x.shape
    H = params["w_hh"].shape[1]
    w_ih, w_hh = params["w_ih"], params["w_hh"]
    b = params["b_ih"] + params["b_hh"]

    def step(carry, x_t):
        h, c = carry
        gates = x_t @ w_ih.T + h @ w_hh.T + b
        i = jax.nn.sigmoid(gates[:, 0 * H:1 * H])
        f = jax.nn.sigmoid(gates[:, 1 * H:2 * H])
        g = jnp.tanh(gates[:, 2 * H:3 * H])
        o = jax.nn.sigmoid(gates[:, 3 * H:4 * H])
        c = f * c + i * g
        h = o * jnp.tanh(c)
        return (h, c), None

    h0 = jnp.zeros((B, H), jnp.float32)
    (h, _), _ = jax.lax.scan(step, (h0, h0), jnp.transpose(x, (1, 0, 2)))
    y = h @ params["w_fc"].T + params["b_fc"]
    return y.reshape(y.shape[0] * y.shape[1], 1)


# ----------------------------------------------------------------------------
# Deterministic parameter init (PyTorch-style uniform(-1/sqrt(H), 1/sqrt(H))).
# ----------------------------------------------------------------------------
def init_params(key, input_size, hidden_size, output_size):
    k = 1.0 / jnp.sqrt(jnp.float32(hidden_size))
    keys = jax.random.split(key, 6)
    u = lambda kk, shape: jax.random.uniform(kk, shape, jnp.float32, -k, k)
    return {
        "w_ih": u(keys[0], (4 * hidden_size, input_size)),
        "w_hh": u(keys[1], (4 * hidden_size, hidden_size)),
        "b_ih": u(keys[2], (4 * hidden_size,)),
        "b_hh": u(keys[3], (4 * hidden_size,)),
        "w_fc": u(keys[4], (output_size, hidden_size)),
        "b_fc": u(keys[5], (output_size,)),
    }


if __name__ == "__main__":
    BATCH, SEQ, INPUT_SIZE, HIDDEN_SIZE, OUTPUT_SIZE = 2, 8, 16, 32, 1

    key = jax.random.PRNGKey(0)
    k_x, k_p = jax.random.split(key)
    x = jax.random.normal(k_x, (BATCH, SEQ, INPUT_SIZE), jnp.float32)
    params = init_params(k_p, INPUT_SIZE, HIDDEN_SIZE, OUTPUT_SIZE)

    out = lstm_nn_forward(x, params)
    out = jax.block_until_ready(out)

    ref = lstm_nn_reference(x, params)
    assert out.shape == (BATCH * OUTPUT_SIZE, 1), out.shape
    assert jnp.allclose(out, ref, atol=1e-5, rtol=1e-5), (out, ref)

    print("KERNEL_OK")
</pallas_src>

<mosaic_0001>
module attributes {stable_mosaic.version = 11 : i64} {
  func.func @_lstm_chunk_kernel(%arg0: i32, %arg1: memref<64x16xf32, #tpu.memory_space<vmem>>, %arg2: memref<16x512xf32, #tpu.memory_space<vmem>>, %arg3: memref<128x512xf32, #tpu.memory_space<vmem>>, %arg4: memref<1x512xf32, #tpu.memory_space<vmem>>, %arg5: memref<128x128xf32, #tpu.memory_space<vmem>>, %arg6: memref<1x128xf32, #tpu.memory_space<vmem>>, %arg7: memref<8x128xf32, #tpu.memory_space<vmem>>, %arg8: memref<8x128xf32, #tpu.memory_space<vmem>>, %arg9: memref<8x128xf32, #tpu.memory_space<vmem>>, %arg10: memref<64x512xf32, #tpu.memory_space<vmem>>) attributes {dimension_semantics = [#tpu.dimension_semantics<arbitrary>], iteration_bounds = array<i64: 1>, scalar_prefetch = 0 : i64, scratch_operands = 3 : i64, tpu.core_type = #tpu.core_type<tc>, window_params = [{transform_indices = @transform_0, window_bounds = array<i64: 64, 16>}, {pipeline_mode = #tpu.pipeline_mode<synchronous>, transform_indices = @transform_1, window_bounds = array<i64: 16, 512>}, {pipeline_mode = #tpu.pipeline_mode<synchronous>, transform_indices = @transform_2, window_bounds = array<i64: 128, 512>}, {pipeline_mode = #tpu.pipeline_mode<synchronous>, transform_indices = @transform_3, window_bounds = array<i64: 1, 512>}, {pipeline_mode = #tpu.pipeline_mode<synchronous>, transform_indices = @transform_4, window_bounds = array<i64: 128, 128>}, {pipeline_mode = #tpu.pipeline_mode<synchronous>, transform_indices = @transform_5, window_bounds = array<i64: 1, 128>}, {pipeline_mode = #tpu.pipeline_mode<synchronous>, transform_indices = @transform_6, window_bounds = array<i64: 8, 128>}]} {
    %c0_i32 = arith.constant 0 : i32
    %0 = arith.cmpi eq, %arg0, %c0_i32 : i32
    %1 = arith.extui %0 : i1 to i32
    %c0_i32_0 = arith.constant 0 : i32
    %2 = arith.cmpi ne, %1, %c0_i32_0 : i32
    scf.if %2 {
      %cst_69 = arith.constant 0.000000e+00 : f32
      %266 = vector.broadcast %cst_69 : f32 to vector<8x128xf32>
      %c0_70 = arith.constant 0 : index
      %c0_71 = arith.constant 0 : index
      %267 = vector.load %arg8[%c0_70, %c0_71] : memref<8x128xf32, #tpu.memory_space<vmem>>, vector<8x128xf32>
      tpu.vector_store %arg8[%c0_70, %c0_71], %266 {strides = array<i32>} : memref<8x128xf32, #tpu.memory_space<vmem>>, vector<8x128xf32>,
      %cst_72 = arith.constant 0.000000e+00 : f32
      %268 = vector.broadcast %cst_72 : f32 to vector<8x128xf32>
      %c0_73 = arith.constant 0 : index
      %c0_74 = arith.constant 0 : index
      %269 = vector.load %arg9[%c0_73, %c0_74] : memref<8x128xf32, #tpu.memory_space<vmem>>, vector<8x128xf32>
      tpu.vector_store %arg9[%c0_73, %c0_74], %268 {strides = array<i32>} : memref<8x128xf32, #tpu.memory_space<vmem>>, vector<8x128xf32>,
    } else {
    }
    %c0 = arith.constant 0 : index
    %c0_1 = arith.constant 0 : index
    %3 = vector.load %arg1[%c0, %c0_1] : memref<64x16xf32, #tpu.memory_space<vmem>>, vector<64x16xf32>
    %c0_2 = arith.constant 0 : index
    %c0_3 = arith.constant 0 : index
    %4 = vector.load %arg2[%c0_2, %c0_3] : memref<16x512xf32, #tpu.memory_space<vmem>>, vector<16x512xf32>
    %cst = arith.constant dense<0.000000e+00> : vector<64x512xf32>
    %5 = tpu.matmul %3, %4, %cst {dimension_numbers = #tpu.dot_dimension_numbers<[1], [0], [0], [1], [0, 0, 1, 1], [], []>} : vector<64x16xf32>, vector<16x512xf32>, vector<64x512xf32> -> vector<64x512xf32>
    %c0_4 = arith.constant 0 : index
    %c0_5 = arith.constant 0 : index
    %6 = vector.load %arg4[%c0_4, %c0_5] : memref<1x512xf32, #tpu.memory_space<vmem>>, vector<1x512xf32>
    %7 = vector.broadcast %6 : vector<1x512xf32> to vector<64x512xf32>
    %8 = arith.addf %5, %7 : vector<64x512xf32>
    %c0_6 = arith.constant 0 : index
    %c0_7 = arith.constant 0 : index
    %9 = vector.load %arg10[%c0_6, %c0_7] : memref<64x512xf32, #tpu.memory_space<vmem>>, vector<64x512xf32>
    tpu.vector_store %arg10[%c0_6, %c0_7], %8 {strides = array<i32>} : memref<64x512xf32, #tpu.memory_space<vmem>>, vector<64x512xf32>,
    %c0_8 = arith.constant 0 : index
    %c0_9 = arith.constant 0 : index
    %10 = vector.load %arg3[%c0_8, %c0_9] : memref<128x512xf32, #tpu.memory_space<vmem>>, vector<128x512xf32>
    %c0_10 = arith.constant 0 : index
    %c0_11 = arith.constant 0 : index
    %11 = vector.load %arg8[%c0_10, %c0_11] : memref<8x128xf32, #tpu.memory_space<vmem>>, vector<8x128xf32>
    %c0_12 = arith.constant 0 : index
    %c0_13 = arith.constant 0 : index
    %12 = vector.load %arg9[%c0_12, %c0_13] : memref<8x128xf32, #tpu.memory_space<vmem>>, vector<8x128xf32>
    %c0_i32_14 = arith.constant 0 : i32
    %c8_i32 = arith.constant 8 : i32
    %13 = arith.muli %c0_i32_14, %c8_i32 : i32
    %14 = tpu.assume_multiple %13, 8 : i32
    %15 = arith.index_cast %14 : i32 to index
    %c0_15 = arith.constant 0 : index
    %16 = vector.load %arg10[%15, %c0_15] : memref<64x512xf32, #tpu.memory_space<vmem>>, vector<8x512xf32>
    %cst_16 = arith.constant dense<0.000000e+00> : vector<8x512xf32>
    %17 = tpu.matmul %11, %10, %cst_16 {dimension_numbers = #tpu.dot_dimension_numbers<[1], [0], [0], [1], [0, 0, 1, 1], [], []>} : vector<8x128xf32>, vector<128x512xf32>, vector<8x512xf32> -> vector<8x512xf32>
    %18 = arith.addf %16, %17 : vector<8x512xf32>
    %19 = vector.extract_strided_slice %18 {offsets = [0, 0], sizes = [8, 128], strides = [1, 1]} : vector<8x512xf32> to vector<8x128xf32>
    %20 = arith.negf %19 : vector<8x128xf32>
    %21 = math.exp %20 : vector<8x128xf32>
    %cst_17 = arith.constant 1.000000e+00 : f32
    %22 = vector.broadcast %cst_17 : f32 to vector<8x128xf32>
    %23 = arith.addf %22, %21 : vector<8x128xf32>
    %24 = arith.divf %22, %23 : vector<8x128xf32>
    %25 = vector.extract_strided_slice %18 {offsets = [0, 128], sizes = [8, 128], strides = [1, 1]} : vector<8x512xf32> to vector<8x128xf32>
    %26 = arith.negf %25 : vector<8x128xf32>
    %27 = math.exp %26 : vector<8x128xf32>
    %cst_18 = arith.constant 1.000000e+00 : f32
    %28 = vector.broadcast %cst_18 : f32 to vector<8x128xf32>
    %29 = arith.addf %28, %27 : vector<8x128xf32>
    %30 = arith.divf %28, %29 : vector<8x128xf32>
    %31 = vector.extract_strided_slice %18 {offsets = [0, 256], sizes = [8, 128], strides = [1, 1]} : vector<8x512xf32> to vector<8x128xf32>
    %32 = math.tanh %31 : vector<8x128xf32>
    %33 = vector.extract_strided_slice %18 {offsets = [0, 384], sizes = [8, 128], strides = [1, 1]} : vector<8x512xf32> to vector<8x128xf32>
    %34 = arith.negf %33 : vector<8x128xf32>
    %35 = math.exp %34 : vector<8x128xf32>
    %cst_19 = arith.constant 1.000000e+00 : f32
    %36 = vector.broadcast %cst_19 : f32 to vector<8x128xf32>
    %37 = arith.addf %36, %35 : vector<8x128xf32>
    %38 = arith.divf %36, %37 : vector<8x128xf32>
    %39 = arith.mulf %30, %12 : vector<8x128xf32>
    %40 = arith.mulf %24, %32 : vector<8x128xf32>
    %41 = arith.addf %39, %40 : vector<8x128xf32>
    %42 = math.tanh %41 : vector<8x128xf32>
    %43 = arith.mulf %38, %42 : vector<8x128xf32>
    %c1_i32 = arith.constant 1 : i32
    %c8_i32_20 = arith.constant 8 : i32
    %44 = arith.muli %c1_i32, %c8_i32_20 : i32
    %45 = tpu.assume_multiple %44, 8 : i32
    %46 = arith.index_cast %45 : i32 to index
    %c0_21 = arith.constant 0 : index
    %47 = vector.load %arg10[%46, %c0_21] : memref<64x512xf32, #tpu.memory_space<vmem>>, vector<8x512xf32>
    %cst_22 = arith.constant dense<0.000000e+00> : vector<8x512xf32>
    %48 = tpu.matmul %43, %10, %cst_22 {dimension_numbers = #tpu.dot_dimension_numbers<[1], [0], [0], [1], [0, 0, 1, 1], [], []>} : vector<8x128xf32>, vector<128x512xf32>, vector<8x512xf32> -> vector<8x512xf32>
    %49 = arith.addf %47, %48 : vector<8x512xf32>
    %50 = vector.extract_strided_slice %49 {offsets = [0, 0], sizes = [8, 128], strides = [1, 1]} : vector<8x512xf32> to vector<8x128xf32>
    %51 = arith.negf %50 : vector<8x128xf32>
    %52 = math.exp %51 : vector<8x128xf32>
    %cst_23 = arith.constant 1.000000e+00 : f32
    %53 = vector.broadcast %cst_23 : f32 to vector<8x128xf32>
    %54 = arith.addf %53, %52 : vector<8x128xf32>
    %55 = arith.divf %53, %54 : vector<8x128xf32>
    %56 = vector.extract_strided_slice %49 {offsets = [0, 128], sizes = [8, 128], strides = [1, 1]} : vector<8x512xf32> to vector<8x128xf32>
    %57 = arith.negf %56 : vector<8x128xf32>
    %58 = math.exp %57 : vector<8x128xf32>
    %cst_24 = arith.constant 1.000000e+00 : f32
    %59 = vector.broadcast %cst_24 : f32 to vector<8x128xf32>
    %60 = arith.addf %59, %58 : vector<8x128xf32>
    %61 = arith.divf %59, %60 : vector<8x128xf32>
    %62 = vector.extract_strided_slice %49 {offsets = [0, 256], sizes = [8, 128], strides = [1, 1]} : vector<8x512xf32> to vector<8x128xf32>
    %63 = math.tanh %62 : vector<8x128xf32>
    %64 = vector.extract_strided_slice %49 {offsets = [0, 384], sizes = [8, 128], strides = [1, 1]} : vector<8x512xf32> to vector<8x128xf32>
    %65 = arith.negf %64 : vector<8x128xf32>
    %66 = math.exp %65 : vector<8x128xf32>
    %cst_25 = arith.constant 1.000000e+00 : f32
    %67 = vector.broadcast %cst_25 : f32 to vector<8x128xf32>
    %68 = arith.addf %67, %66 : vector<8x128xf32>
    %69 = arith.divf %67, %68 : vector<8x128xf32>
    %70 = arith.mulf %61, %41 : vector<8x128xf32>
    %71 = arith.mulf %55, %63 : vector<8x128xf32>
    %72 = arith.addf %70, %71 : vector<8x128xf32>
    %73 = math.tanh %72 : vector<8x128xf32>
    %74 = arith.mulf %69, %73 : vector<8x128xf32>
    %c2_i32 = arith.constant 2 : i32
    %c8_i32_26 = arith.constant 8 : i32
    %75 = arith.muli %c2_i32, %c8_i32_26 : i32
    %76 = tpu.assume_multiple %75, 8 : i32
    %77 = arith.index_cast %76 : i32 to index
    %c0_27 = arith.constant 0 : index
    %78 = vector.load %arg10[%77, %c0_27] : memref<64x512xf32, #tpu.memory_space<vmem>>, vector<8x512xf32>
    %cst_28 = arith.constant dense<0.000000e+00> : vector<8x512xf32>
    %79 = tpu.matmul %74, %10, %cst_28 {dimension_numbers = #tpu.dot_dimension_numbers<[1], [0], [0], [1], [0, 0, 1, 1], [], []>} : vector<8x128xf32>, vector<128x512xf32>, vector<8x512xf32> -> vector<8x512xf32>
    %80 = arith.addf %78, %79 : vector<8x512xf32>
    %81 = vector.extract_strided_slice %80 {offsets = [0, 0], sizes = [8, 128], strides = [1, 1]} : vector<8x512xf32> to vector<8x128xf32>
    %82 = arith.negf %81 : vector<8x128xf32>
    %83 = math.exp %82 : vector<8x128xf32>
    %cst_29 = arith.constant 1.000000e+00 : f32
    %84 = vector.broadcast %cst_29 : f32 to vector<8x128xf32>
    %85 = arith.addf %84, %83 : vector<8x128xf32>
    %86 = arith.divf %84, %85 : vector<8x128xf32>
    %87 = vector.extract_strided_slice %80 {offsets = [0, 128], sizes = [8, 128], strides = [1, 1]} : vector<8x512xf32> to vector<8x128xf32>
    %88 = arith.negf %87 : vector<8x128xf32>
    %89 = math.exp %88 : vector<8x128xf32>
    %cst_30 = arith.constant 1.000000e+00 : f32
    %90 = vector.broadcast %cst_30 : f32 to vector<8x128xf32>
    %91 = arith.addf %90, %89 : vector<8x128xf32>
    %92 = arith.divf %90, %91 : vector<8x128xf32>
    %93 = vector.extract_strided_slice %80 {offsets = [0, 256], sizes = [8, 128], strides = [1, 1]} : vector<8x512xf32> to vector<8x128xf32>
    %94 = math.tanh %93 : vector<8x128xf32>
    %95 = vector.extract_strided_slice %80 {offsets = [0, 384], sizes = [8, 128], strides = [1, 1]} : vector<8x512xf32> to vector<8x128xf32>
    %96 = arith.negf %95 : vector<8x128xf32>
    %97 = math.exp %96 : vector<8x128xf32>
    %cst_31 = arith.constant 1.000000e+00 : f32
    %98 = vector.broadcast %cst_31 : f32 to vector<8x128xf32>
    %99 = arith.addf %98, %97 : vector<8x128xf32>
    %100 = arith.divf %98, %99 : vector<8x128xf32>
    %101 = arith.mulf %92, %72 : vector<8x128xf32>
    %102 = arith.mulf %86, %94 : vector<8x128xf32>
    %103 = arith.addf %101, %102 : vector<8x128xf32>
    %104 = math.tanh %103 : vector<8x128xf32>
    %105 = arith.mulf %100, %104 : vector<8x128xf32>
    %c3_i32 = arith.constant 3 : i32
    %c8_i32_32 = arith.constant 8 : i32
    %106 = arith.muli %c3_i32, %c8_i32_32 : i32
    %107 = tpu.assume_multiple %106, 8 : i32
    %108 = arith.index_cast %107 : i32 to index
    %c0_33 = arith.constant 0 : index
    %109 = vector.load %arg10[%108, %c0_33] : memref<64x512xf32, #tpu.memory_space<vmem>>, vector<8x512xf32>
    %cst_34 = arith.constant dense<0.000000e+00> : vector<8x512xf32>
    %110 = tpu.matmul %105, %10, %cst_34 {dimension_numbers = #tpu.dot_dimension_numbers<[1], [0], [0], [1], [0, 0, 1, 1], [], []>} : vector<8x128xf32>, vector<128x512xf32>, vector<8x512xf32> -> vector<8x512xf32>
    %111 = arith.addf %109, %110 : vector<8x512xf32>
    %112 = vector.extract_strided_slice %111 {offsets = [0, 0], sizes = [8, 128], strides = [1, 1]} : vector<8x512xf32> to vector<8x128xf32>
    %113 = arith.negf %112 : vector<8x128xf32>
    %114 = math.exp %113 : vector<8x128xf32>
    %cst_35 = arith.constant 1.000000e+00 : f32
    %115 = vector.broadcast %cst_35 : f32 to vector<8x128xf32>
    %116 = arith.addf %115, %114 : vector<8x128xf32>
    %117 = arith.divf %115, %116 : vector<8x128xf32>
    %118 = vector.extract_strided_slice %111 {offsets = [0, 128], sizes = [8, 128], strides = [1, 1]} : vector<8x512xf32> to vector<8x128xf32>
    %119 = arith.negf %118 : vector<8x128xf32>
    %120 = math.exp %119 : vector<8x128xf32>
    %cst_36 = arith.constant 1.000000e+00 : f32
    %121 = vector.broadcast %cst_36 : f32 to vector<8x128xf32>
    %122 = arith.addf %121, %120 : vector<8x128xf32>
    %123 = arith.divf %121, %122 : vector<8x128xf32>
    %124 = vector.extract_strided_slice %111 {offsets = [0, 256], sizes = [8, 128], strides = [1, 1]} : vector<8x512xf32> to vector<8x128xf32>
    %125 = math.tanh %124 : vector<8x128xf32>
    %126 = vector.extract_strided_slice %111 {offsets = [0, 384], sizes = [8, 128], strides = [1, 1]} : vector<8x512xf32> to vector<8x128xf32>
    %127 = arith.negf %126 : vector<8x128xf32>
    %128 = math.exp %127 : vector<8x128xf32>
    %cst_37 = arith.constant 1.000000e+00 : f32
    %129 = vector.broadcast %cst_37 : f32 to vector<8x128xf32>
    %130 = arith.addf %129, %128 : vector<8x128xf32>
    %131 = arith.divf %129, %130 : vector<8x128xf32>
    %132 = arith.mulf %123, %103 : vector<8x128xf32>
    %133 = arith.mulf %117, %125 : vector<8x128xf32>
    %134 = arith.addf %132, %133 : vector<8x128xf32>
    %135 = math.tanh %134 : vector<8x128xf32>
    %136 = arith.mulf %131, %135 : vector<8x128xf32>
    %c4_i32 = arith.constant 4 : i32
    %c8_i32_38 = arith.constant 8 : i32
    %137 = arith.muli %c4_i32, %c8_i32_38 : i32
    %138 = tpu.assume_multiple %137, 8 : i32
    %139 = arith.index_cast %138 : i32 to index
    %c0_39 = arith.constant 0 : index
    %140 = vector.load %arg10[%139, %c0_39] : memref<64x512xf32, #tpu.memory_space<vmem>>, vector<8x512xf32>
    %cst_40 = arith.constant dense<0.000000e+00> : vector<8x512xf32>
    %141 = tpu.matmul %136, %10, %cst_40 {dimension_numbers = #tpu.dot_dimension_numbers<[1], [0], [0], [1], [0, 0, 1, 1], [], []>} : vector<8x128xf32>, vector<128x512xf32>, vector<8x512xf32> -> vector<8x512xf32>
    %142 = arith.addf %140, %141 : vector<8x512xf32>
    %143 = vector.extract_strided_slice %142 {offsets = [0, 0], sizes = [8, 128], strides = [1, 1]} : vector<8x512xf32> to vector<8x128xf32>
    %144 = arith.negf %143 : vector<8x128xf32>
    %145 = math.exp %144 : vector<8x128xf32>
    %cst_41 = arith.constant 1.000000e+00 : f32
    %146 = vector.broadcast %cst_41 : f32 to vector<8x128xf32>
    %147 = arith.addf %146, %145 : vector<8x128xf32>
    %148 = arith.divf %146, %147 : vector<8x128xf32>
    %149 = vector.extract_strided_slice %142 {offsets = [0, 128], sizes = [8, 128], strides = [1, 1]} : vector<8x512xf32> to vector<8x128xf32>
    %150 = arith.negf %149 : vector<8x128xf32>
    %151 = math.exp %150 : vector<8x128xf32>
    %cst_42 = arith.constant 1.000000e+00 : f32
    %152 = vector.broadcast %cst_42 : f32 to vector<8x128xf32>
    %153 = arith.addf %152, %151 : vector<8x128xf32>
    %154 = arith.divf %152, %153 : vector<8x128xf32>
    %155 = vector.extract_strided_slice %142 {offsets = [0, 256], sizes = [8, 128], strides = [1, 1]} : vector<8x512xf32> to vector<8x128xf32>
    %156 = math.tanh %155 : vector<8x128xf32>
    %157 = vector.extract_strided_slice %142 {offsets = [0, 384], sizes = [8, 128], strides = [1, 1]} : vector<8x512xf32> to vector<8x128xf32>
    %158 = arith.negf %157 : vector<8x128xf32>
    %159 = math.exp %158 : vector<8x128xf32>
    %cst_43 = arith.constant 1.000000e+00 : f32
    %160 = vector.broadcast %cst_43 : f32 to vector<8x128xf32>
    %161 = arith.addf %160, %159 : vector<8x128xf32>
    %162 = arith.divf %160, %161 : vector<8x128xf32>
    %163 = arith.mulf %154, %134 : vector<8x128xf32>
    %164 = arith.mulf %148, %156 : vector<8x128xf32>
    %165 = arith.addf %163, %164 : vector<8x128xf32>
    %166 = math.tanh %165 : vector<8x128xf32>
    %167 = arith.mulf %162, %166 : vector<8x128xf32>
    %c5_i32 = arith.constant 5 : i32
    %c8_i32_44 = arith.constant 8 : i32
    %168 = arith.muli %c5_i32, %c8_i32_44 : i32
    %169 = tpu.assume_multiple %168, 8 : i32
    %170 = arith.index_cast %169 : i32 to index
    %c0_45 = arith.constant 0 : index
    %171 = vector.load %arg10[%170, %c0_45] : memref<64x512xf32, #tpu.memory_space<vmem>>, vector<8x512xf32>
    %cst_46 = arith.constant dense<0.000000e+00> : vector<8x512xf32>
    %172 = tpu.matmul %167, %10, %cst_46 {dimension_numbers = #tpu.dot_dimension_numbers<[1], [0], [0], [1], [0, 0, 1, 1], [], []>} : vector<8x128xf32>, vector<128x512xf32>, vector<8x512xf32> -> vector<8x512xf32>
    %173 = arith.addf %171, %172 : vector<8x512xf32>
    %174 = vector.extract_strided_slice %173 {offsets = [0, 0], sizes = [8, 128], strides = [1, 1]} : vector<8x512xf32> to vector<8x128xf32>
    %175 = arith.negf %174 : vector<8x128xf32>
    %176 = math.exp %175 : vector<8x128xf32>
    %cst_47 = arith.constant 1.000000e+00 : f32
    %177 = vector.broadcast %cst_47 : f32 to vector<8x128xf32>
    %178 = arith.addf %177, %176 : vector<8x128xf32>
    %179 = arith.divf %177, %178 : vector<8x128xf32>
    %180 = vector.extract_strided_slice %173 {offsets = [0, 128], sizes = [8, 128], strides = [1, 1]} : vector<8x512xf32> to vector<8x128xf32>
    %181 = arith.negf %180 : vector<8x128xf32>
    %182 = math.exp %181 : vector<8x128xf32>
    %cst_48 = arith.constant 1.000000e+00 : f32
    %183 = vector.broadcast %cst_48 : f32 to vector<8x128xf32>
    %184 = arith.addf %183, %182 : vector<8x128xf32>
    %185 = arith.divf %183, %184 : vector<8x128xf32>
    %186 = vector.extract_strided_slice %173 {offsets = [0, 256], sizes = [8, 128], strides = [1, 1]} : vector<8x512xf32> to vector<8x128xf32>
    %187 = math.tanh %186 : vector<8x128xf32>
    %188 = vector.extract_strided_slice %173 {offsets = [0, 384], sizes = [8, 128], strides = [1, 1]} : vector<8x512xf32> to vector<8x128xf32>
    %189 = arith.negf %188 : vector<8x128xf32>
    %190 = math.exp %189 : vector<8x128xf32>
    %cst_49 = arith.constant 1.000000e+00 : f32
    %191 = vector.broadcast %cst_49 : f32 to vector<8x128xf32>
    %192 = arith.addf %191, %190 : vector<8x128xf32>
    %193 = arith.divf %191, %192 : vector<8x128xf32>
    %194 = arith.mulf %185, %165 : vector<8x128xf32>
    %195 = arith.mulf %179, %187 : vector<8x128xf32>
    %196 = arith.addf %194, %195 : vector<8x128xf32>
    %197 = math.tanh %196 : vector<8x128xf32>
    %198 = arith.mulf %193, %197 : vector<8x128xf32>
    %c6_i32 = arith.constant 6 : i32
    %c8_i32_50 = arith.constant 8 : i32
    %199 = arith.muli %c6_i32, %c8_i32_50 : i32
    %200 = tpu.assume_multiple %199, 8 : i32
    %201 = arith.index_cast %200 : i32 to index
    %c0_51 = arith.constant 0 : index
    %202 = vector.load %arg10[%201, %c0_51] : memref<64x512xf32, #tpu.memory_space<vmem>>, vector<8x512xf32>
    %cst_52 = arith.constant dense<0.000000e+00> : vector<8x512xf32>
    %203 = tpu.matmul %198, %10, %cst_52 {dimension_numbers = #tpu.dot_dimension_numbers<[1], [0], [0], [1], [0, 0, 1, 1], [], []>} : vector<8x128xf32>, vector<128x512xf32>, vector<8x512xf32> -> vector<8x512xf32>
    %204 = arith.addf %202, %203 : vector<8x512xf32>
    %205 = vector.extract_strided_slice %204 {offsets = [0, 0], sizes = [8, 128], strides = [1, 1]} : vector<8x512xf32> to vector<8x128xf32>
    %206 = arith.negf %205 : vector<8x128xf32>
    %207 = math.exp %206 : vector<8x128xf32>
    %cst_53 = arith.constant 1.000000e+00 : f32
    %208 = vector.broadcast %cst_53 : f32 to vector<8x128xf32>
    %209 = arith.addf %208, %207 : vector<8x128xf32>
    %210 = arith.divf %208, %209 : vector<8x128xf32>
    %211 = vector.extract_strided_slice %204 {offsets = [0, 128], sizes = [8, 128], strides = [1, 1]} : vector<8x512xf32> to vector<8x128xf32>
    %212 = arith.negf %211 : vector<8x128xf32>
    %213 = math.exp %212 : vector<8x128xf32>
    %cst_54 = arith.constant 1.000000e+00 : f32
    %214 = vector.broadcast %cst_54 : f32 to vector<8x128xf32>
    %215 = arith.addf %214, %213 : vector<8x128xf32>
    %216 = arith.divf %214, %215 : vector<8x128xf32>
    %217 = vector.extract_strided_slice %204 {offsets = [0, 256], sizes = [8, 128], strides = [1, 1]} : vector<8x512xf32> to vector<8x128xf32>
    %218 = math.tanh %217 : vector<8x128xf32>
    %219 = vector.extract_strided_slice %204 {offsets = [0, 384], sizes = [8, 128], strides = [1, 1]} : vector<8x512xf32> to vector<8x128xf32>
    %220 = arith.negf %219 : vector<8x128xf32>
    %221 = math.exp %220 : vector<8x128xf32>
    %cst_55 = arith.constant 1.000000e+00 : f32
    %222 = vector.broadcast %cst_55 : f32 to vector<8x128xf32>
    %223 = arith.addf %222, %221 : vector<8x128xf32>
    %224 = arith.divf %222, %223 : vector<8x128xf32>
    %225 = arith.mulf %216, %196 : vector<8x128xf32>
    %226 = arith.mulf %210, %218 : vector<8x128xf32>
    %227 = arith.addf %225, %226 : vector<8x128xf32>
    %228 = math.tanh %227 : vector<8x128xf32>
    %229 = arith.mulf %224, %228 : vector<8x128xf32>
    %c7_i32 = arith.constant 7 : i32
    %c8_i32_56 = arith.constant 8 : i32
    %230 = arith.muli %c7_i32, %c8_i32_56 : i32
    %231 = tpu.assume_multiple %230, 8 : i32
    %232 = arith.index_cast %231 : i32 to index
    %c0_57 = arith.constant 0 : index
    %233 = vector.load %arg10[%232, %c0_57] : memref<64x512xf32, #tpu.memory_space<vmem>>, vector<8x512xf32>
    %cst_58 = arith.constant dense<0.000000e+00> : vector<8x512xf32>
    %234 = tpu.matmul %229, %10, %cst_58 {dimension_numbers = #tpu.dot_dimension_numbers<[1], [0], [0], [1], [0, 0, 1, 1], [], []>} : vector<8x128xf32>, vector<128x512xf32>, vector<8x512xf32> -> vector<8x512xf32>
    %235 = arith.addf %233, %234 : vector<8x512xf32>
    %236 = vector.extract_strided_slice %235 {offsets = [0, 0], sizes = [8, 128], strides = [1, 1]} : vector<8x512xf32> to vector<8x128xf32>
    %237 = arith.negf %236 : vector<8x128xf32>
    %238 = math.exp %237 : vector<8x128xf32>
    %cst_59 = arith.constant 1.000000e+00 : f32
    %239 = vector.broadcast %cst_59 : f32 to vector<8x128xf32>
    %240 = arith.addf %239, %238 : vector<8x128xf32>
    %241 = arith.divf %239, %240 : vector<8x128xf32>
    %242 = vector.extract_strided_slice %235 {offsets = [0, 128], sizes = [8, 128], strides = [1, 1]} : vector<8x512xf32> to vector<8x128xf32>
    %243 = arith.negf %242 : vector<8x128xf32>
    %244 = math.exp %243 : vector<8x128xf32>
    %cst_60 = arith.constant 1.000000e+00 : f32
    %245 = vector.broadcast %cst_60 : f32 to vector<8x128xf32>
    %246 = arith.addf %245, %244 : vector<8x128xf32>
    %247 = arith.divf %245, %246 : vector<8x128xf32>
    %248 = vector.extract_strided_slice %235 {offsets = [0, 256], sizes = [8, 128], strides = [1, 1]} : vector<8x512xf32> to vector<8x128xf32>
    %249 = math.tanh %248 : vector<8x128xf32>
    %250 = vector.extract_strided_slice %235 {offsets = [0, 384], sizes = [8, 128], strides = [1, 1]} : vector<8x512xf32> to vector<8x128xf32>
    %251 = arith.negf %250 : vector<8x128xf32>
    %252 = math.exp %251 : vector<8x128xf32>
    %cst_61 = arith.constant 1.000000e+00 : f32
    %253 = vector.broadcast %cst_61 : f32 to vector<8x128xf32>
    %254 = arith.addf %253, %252 : vector<8x128xf32>
    %255 = arith.divf %253, %254 : vector<8x128xf32>
    %256 = arith.mulf %247, %227 : vector<8x128xf32>
    %257 = arith.mulf %241, %249 : vector<8x128xf32>
    %258 = arith.addf %256, %257 : vector<8x128xf32>
    %259 = math.tanh %258 : vector<8x128xf32>
    %260 = arith.mulf %255, %259 : vector<8x128xf32>
    %c8_i32_62 = arith.constant 8 : i32
    %c0_63 = arith.constant 0 : index
    %c0_64 = arith.constant 0 : index
    %261 = vector.load %arg8[%c0_63, %c0_64] : memref<8x128xf32, #tpu.memory_space<vmem>>, vector<8x128xf32>
    tpu.vector_store %arg8[%c0_63, %c0_64], %260 {strides = array<i32>} : memref<8x128xf32, #tpu.memory_space<vmem>>, vector<8x128xf32>,
    %c0_65 = arith.constant 0 : index
    %c0_66 = arith.constant 0 : index
    %262 = vector.load %arg9[%c0_65, %c0_66] : memref<8x128xf32, #tpu.memory_space<vmem>>, vector<8x128xf32>
    tpu.vector_store %arg9[%c0_65, %c0_66], %258 {strides = array<i32>} : memref<8x128xf32, #tpu.memory_space<vmem>>, vector<8x128xf32>,
    %c0_i32_67 = arith.constant 0 : i32
    %263 = arith.cmpi eq, %arg0, %c0_i32_67 : i32
    %264 = arith.extui %263 : i1 to i32
    %c0_i32_68 = arith.constant 0 : i32
    %265 = arith.cmpi ne, %264, %c0_i32_68 : i32
    scf.if %265 {
      %c0_69 = arith.constant 0 : index
      %c0_70 = arith.constant 0 : index
      %266 = vector.load %arg5[%c0_69, %c0_70] : memref<128x128xf32, #tpu.memory_space<vmem>>, vector<128x128xf32>
      %cst_71 = arith.constant dense<0.000000e+00> : vector<8x128xf32>
      %267 = tpu.matmul %260, %266, %cst_71 {dimension_numbers = #tpu.dot_dimension_numbers<[1], [0], [0], [1], [0, 0, 1, 1], [], []>} : vector<8x128xf32>, vector<128x128xf32>, vector<8x128xf32> -> vector<8x128xf32>
      %c0_72 = arith.constant 0 : index
      %c0_73 = arith.constant 0 : index
      %268 = vector.load %arg6[%c0_72, %c0_73] : memref<1x128xf32, #tpu.memory_space<vmem>>, vector<1x128xf32>
      %269 = vector.broadcast %268 : vector<1x128xf32> to vector<8x128xf32>
      %270 = arith.addf %267, %269 : vector<8x128xf32>
      %c0_74 = arith.constant 0 : index
      %c0_75 = arith.constant 0 : index
      %271 = vector.load %arg7[%c0_74, %c0_75] : memref<8x128xf32, #tpu.memory_space<vmem>>, vector<8x128xf32>
      tpu.vector_store %arg7[%c0_74, %c0_75], %270 {strides = array<i32>} : memref<8x128xf32, #tpu.memory_space<vmem>>, vector<8x128xf32>,
    } else {
    }
    return
  }
  func.func @transform_0(%arg0: i32) -> (i32, i32) {
    %c0_i32 = arith.constant 0 : i32
    %c0_i32_0 = arith.constant 0 : i32
    return %arg0, %c0_i32 : i32, i32
  }
  func.func @transform_1(%arg0: i32) -> (i32, i32) {
    %c0_i32 = arith.constant 0 : i32
    %c0_i32_0 = arith.constant 0 : i32
    %c0_i32_1 = arith.constant 0 : i32
    return %c0_i32, %c0_i32_0 : i32, i32
  }
  func.func @transform_2(%arg0: i32) -> (i32, i32) {
    %c0_i32 = arith.constant 0 : i32
    %c0_i32_0 = arith.constant 0 : i32
    %c0_i32_1 = arith.constant 0 : i32
    return %c0_i32, %c0_i32_0 : i32, i32
  }
  func.func @transform_3(%arg0: i32) -> (i32, i32) {
    %c0_i32 = arith.constant 0 : i32
    %c0_i32_0 = arith.constant 0 : i32
    %c0_i32_1 = arith.constant 0 : i32
    return %c0_i32, %c0_i32_0 : i32, i32
  }
  func.func @transform_4(%arg0: i32) -> (i32, i32) {
    %c0_i32 = arith.constant 0 : i32
    %c0_i32_0 = arith.constant 0 : i32
    %c0_i32_1 = arith.constant 0 : i32
    return %c0_i32, %c0_i32_0 : i32, i32
  }
  func.func @transform_5(%arg0: i32) -> (i32, i32) {
    %c0_i32 = arith.constant 0 : i32
    %c0_i32_0 = arith.constant 0 : i32
    %c0_i32_1 = arith.constant 0 : i32
    return %c0_i32, %c0_i32_0 : i32, i32
  }
  func.func @transform_6(%arg0: i32) -> (i32, i32) {
    %c0_i32 = arith.constant 0 : i32
    %c0_i32_0 = arith.constant 0 : i32
    %c0_i32_1 = arith.constant 0 : i32
    return %c0_i32, %c0_i32_0 : i32, i32
  }
}

</mosaic_0001>

<llo_original>
// kernel: tpu_custom_call.1
$region0: #{tpu_custom_call.1}
  #allocation0 [shape = 'u32[]', space=smem, size = 0x4, offset = 0x4, fixed_abs, tag = 'smem constant byte address 0x4 - core index']
  #allocation1 [shape = 'u32[144,128]{1,0:T(1,128)}', space=vmem, size = 0x12000, scoped, tag = 'internal scratch']
  #allocation2 [shape = 'f32[8,128]{1,0:T(8,128)}', space=vmem, size = 0x1000, scoped, tag = 'scratch operand']
  #allocation3 [shape = 'f32[8,128]{1,0:T(8,128)}', space=vmem, size = 0x1000, scoped, tag = 'scratch operand']
  #allocation4 [shape = 'f32[64,512]{1,0:T(8,128)}', space=vmem, size = 0x20000, scoped, tag = 'scratch operand']
  %s0 = inlined_call_operand.vmem [shape: f32[64,16], index: 0, kind: input, shape index: {}]
  %s1 = inlined_call_operand.vmem [shape: f32[16,512], index: 1, kind: input, shape index: {}]
  %s2 = inlined_call_operand.hbm [shape: f32[128,512], index: 2, kind: input, shape index: {}]
  %s3 = inlined_call_operand.vmem [shape: f32[1,512], index: 3, kind: input, shape index: {}]
  %s4 = inlined_call_operand.hbm [shape: f32[128,128], index: 4, kind: input, shape index: {}]
  %s5 = inlined_call_operand.vmem [shape: f32[1,128], index: 5, kind: input, shape index: {}]
  %s6 = inlined_call_operand.hbm [shape: f32[8,128], index: 6, kind: output, shape index: {}]
  %s7 = sld [smem:[#allocation0]]
  $region50: #{tpu_custom_call.1} parent=0
    _
  %s9 = ssub.s32 1, %s7
  %s10 = scalar_select 0, %s9, %s7
  $region1: #{tpu_custom_call.1} parent=0
    #allocation5 [shape = 'u8[262144]{0}', space=vmem, size = 0x40000, scoped, tag = 'input window, operand 2, single buffered']
    #allocation6 [shape = 's32[1]{0}', space=sflag, size = 0x4, scoped, tag = 'scoped memory for tpu_custom_call.1']
    #allocation7 [shape = 's32[1]{0}', space=sflag, size = 0x4, scoped, tag = 'scoped memory for tpu_custom_call.1']
    #allocation8 [shape = 'u8[65536]{0}', space=vmem, size = 0x10000, scoped, tag = 'input window, operand 4, single buffered']
    #allocation9 [shape = 's32[1]{0}', space=sflag, size = 0x4, scoped, tag = 'scoped memory for tpu_custom_call.1']
    #allocation10 [shape = 'u8[4096]{0}', space=vmem, size = 0x1000, scoped, tag = 'output window, operand 0, single buffered']
    %11 = vsyncpa [#allocation6], 0
    %12 = vsyncpa [#allocation9], 0
    %13 = vsyncpa [#allocation7], 0
    // Predicated region
    $region2: #{tpu_custom_call.1} parent=1 // pred_check
      _
    $region3: #{tpu_custom_call.1} parent=1 // pred_check_branch
      %15 = sbr.rel (0) target = $region5
    $region4: #{tpu_custom_call.1} parent=1 // pred_region
      _
    $region5: #{tpu_custom_call.1} parent=1 // pred_fallthru
      _
    // Predicated region
    $region6: #{tpu_custom_call.1} parent=1 // pred_check
      _
    $region7: #{tpu_custom_call.1} parent=1 // pred_check_branch
      %17 = sbr.rel (0) target = $region9
    $region8: #{tpu_custom_call.1} parent=1 // pred_region
      _
    $region9: #{tpu_custom_call.1} parent=1 // pred_fallthru
      _
    // Predicated region
    $region10: #{tpu_custom_call.1} parent=1 // pred_check
      _
    $region11: #{tpu_custom_call.1} parent=1 // pred_check_branch
      %19 = sbr.rel (0) target = $region13
    $region12: #{tpu_custom_call.1} parent=1 // pred_region
      %s21 = ssub.s32 8192, 8192
      %22 = vsyncadd [#allocation6], %s21
      %s23 = sshll.u32 [#allocation5], 4
      %s24 = int_to_ptr.vmem [resolvable:$true] %s23
      %29 = dma.hbm_to_vmem [thread:$0]  %s2, 8192, %s24, [#allocation6], 512, 512, 32
    $region13: #{tpu_custom_call.1} parent=1 // pred_fallthru
      _
    // Predicated region
    $region14: #{tpu_custom_call.1} parent=1 // pred_check
      _
    $region15: #{tpu_custom_call.1} parent=1 // pred_check_branch
      %31 = sbr.rel (0) target = $region17
    $region16: #{tpu_custom_call.1} parent=1 // pred_region
      _
    $region17: #{tpu_custom_call.1} parent=1 // pred_fallthru
      _
    // Predicated region
    $region18: #{tpu_custom_call.1} parent=1 // pred_check
      _
    $region19: #{tpu_custom_call.1} parent=1 // pred_check_branch
      %33 = sbr.rel (0) target = $region21
    $region20: #{tpu_custom_call.1} parent=1 // pred_region
      %s35 = ssub.s32 2048, 2048
      %36 = vsyncadd [#allocation9], %s35
      %s37 = sshll.u32 [#allocation8], 4
      %s38 = int_to_ptr.vmem [resolvable:$true] %s37
      %43 = dma.hbm_to_vmem [thread:$0]  %s4, 2048, %s38, [#allocation9], 128, 128, 8
    $region21: #{tpu_custom_call.1} parent=1 // pred_fallthru
      _
    // Predicated region
    $region22: #{tpu_custom_call.1} parent=1 // pred_check
      _
    $region23: #{tpu_custom_call.1} parent=1 // pred_check_branch
      %45 = sbr.rel (0) target = $region25
    $region24: #{tpu_custom_call.1} parent=1 // pred_region
      _
    $region25: #{tpu_custom_call.1} parent=1 // pred_fallthru
      _
    // Predicated region
    $region26: #{tpu_custom_call.1} parent=1 // pred_check
      _
    $region27: #{tpu_custom_call.1} parent=1 // pred_check_branch
      %47 = sbr.rel (0) target = $region29
    $region28: #{tpu_custom_call.1} parent=1 // pred_region
      %48 = dma.done [#allocation6], 8192
    $region29: #{tpu_custom_call.1} parent=1 // pred_fallthru
      _
    // Predicated region
    $region30: #{tpu_custom_call.1} parent=1 // pred_check
      _
    $region31: #{tpu_custom_call.1} parent=1 // pred_check_branch
      %50 = sbr.rel (0) target = $region33
    $region32: #{tpu_custom_call.1} parent=1 // pred_region
      %51 = dma.done [#allocation9], 2048
    $region33: #{tpu_custom_call.1} parent=1 // pred_fallthru
      _
    %p52 = scmp.eq.s32.totalorder 0, 0
    // Predicated region
    $region34: #{tpu_custom_call.1} parent=1 // pred_check
      %p53 = pneg %p52
    $region35: #{tpu_custom_call.1} parent=1 // pred_check_branch
      %55 = sbr.rel (%p53) target = $region37
    $region36: #{tpu_custom_call.1} parent=1 // pred_region
      %56 = vst [vmem:[#allocation2] sm:$0xff] 0.0
      %57 = vst [vmem:[#allocation3] sm:$0xff] 0.0
    $region37: #{tpu_custom_call.1} parent=1 // pred_fallthru
      _
    %v58 = vld [vmem:[%s0] sm:$0xff]
    %v59 = vld [vmem:[%s0 + $0x8] sm:$0xff]
    %v60 = vld [vmem:[%s0 + $0x10] sm:$0xff]
    %v61 = vld [vmem:[%s0 + $0x18] sm:$0xff]
    %v62 = vld [vmem:[%s0 + $0x20] sm:$0xff]
    %v63 = vld [vmem:[%s0 + $0x28] sm:$0xff]
    %v64 = vld [vmem:[%s0 + $0x30] sm:$0xff]
    %v65 = vld [vmem:[%s0 + $0x38] sm:$0xff]
    %v66 = vld [vmem:[%s1] sm:$0xff]
    %v67 = vld [vmem:[%s1 + $0x8] sm:$0xff]
    %v68 = vld [vmem:[%s1 + $0x10] sm:$0xff]
    %v69 = vld [vmem:[%s1 + $0x18] sm:$0xff]
    %v70 = vld [vmem:[%s1 + $0x20] sm:$0xff]
    %v71 = vld [vmem:[%s1 + $0x28] sm:$0xff]
    %v72 = vld [vmem:[%s1 + $0x30] sm:$0xff]
    %v73 = vld [vmem:[%s1 + $0x38] sm:$0xff]
    %v74 = vld [vmem:[%s3] sm:$0xf]
    %v76 = vlaneseq
    %v77 = vshrl.u32 %v76, 7
    %v78 = vsub.s32 0, %v77
    %v79 = vrot.slane %v74, %v78
    %v80 = vlaneseq
    %v81 = vshrl.u32 %v80, 7
    %v82 = vsub.s32 1, %v81
    %v83 = vrot.slane %v74, %v82
    %v84 = vlaneseq
    %v85 = vshrl.u32 %v84, 7
    %v86 = vsub.s32 2, %v85
    %v87 = vrot.slane %v74, %v86
    %v88 = vlaneseq
    %v89 = vshrl.u32 %v88, 7
    %v90 = vsub.s32 3, %v89
    %v91 = vrot.slane %v74, %v90
    %vm96 = vcmask 130048
    %v98 = vsel %vm96, %v58, 0
    %v101 = vsel %vm96, %v59, 0
    %v104 = vsel %vm96, %v60, 0
    %v107 = vsel %vm96, %v61, 0
    %v110 = vsel %vm96, %v62, 0
    %v113 = vsel %vm96, %v63, 0
    %v116 = vsel %vm96, %v64, 0
    %v119 = vsel %vm96, %v65, 0
    %121 = vmatprep.subr.mxu0 %v67
    %122 = vmatpush1.msra.mxu0 %v66
    %123 = vmatprep.subr.mxu0 %v71
    %124 = vmatpush1.msra.mxu0 %v70
    %125 = vmatprep.subr.mxu0 0.0
    %126 = vmatpush1.msra.mxu0 0.0
    %127 = vmatprep.subr.mxu0 0.0
    %128 = vmatpush1.msra.mxu0 0.0
    %129 = vmatprep.subr.mxu0 0.0
    %130 = vmatpush1.msra.mxu0 0.0
    %131 = vmatprep.subr.mxu0 0.0
    %132 = vmatpush1.msra.mxu0 0.0
    %133 = vmatprep.subr.mxu0 0.0
    %134 = vmatpush1.msra.mxu0 0.0
    %135 = vmatprep.subr.mxu0 0.0
    %136 = vmatpush1.msra.mxu0 0.0
    %137 = vmatprep.subr.mxu0 0.0
    %138 = vmatpush1.msra.mxu0 0.0
    %139 = vmatprep.subr.mxu0 0.0
    %140 = vmatpush1.msra.mxu0 0.0
    %141 = vmatprep.subr.mxu0 0.0
    %142 = vmatpush1.msra.mxu0 0.0
    %143 = vmatprep.subr.mxu0 0.0
    %144 = vmatpush1.msra.mxu0 0.0
    %145 = vmatprep.subr.mxu0 0.0
    %146 = vmatpush1.msra.mxu0 0.0
    %147 = vmatprep.subr.mxu0 0.0
    %148 = vmatpush1.msra.mxu0 0.0
    %149 = vmatprep.subr.mxu0 0.0
    %150 = vmatpush1.msra.mxu0 0.0
    %151 = vmatprep.subr.mxu0 0.0
    %152 = vmatpush1.msra.mxu0 0.0
    %153 = vmatprep.subr.mxu0 0.0
    %154 = vmatpush1.msra.mxu0 0.0
    %155 = vmatprep.subr.mxu0 0.0
    %156 = vmatpush1.msra.mxu0 0.0
    %157 = vmatprep.subr.mxu0 0.0
    %158 = vmatpush1.msra.mxu0 0.0
    %159 = vmatprep.subr.mxu0 0.0
    %160 = vmatpush1.msra.mxu0 0.0
    %161 = vmatprep.subr.mxu0 0.0
    %162 = vmatpush1.msra.mxu0 0.0
    %163 = vmatprep.subr.mxu0 0.0
    %164 = vmatpush1.msra.mxu0 0.0
    %165 = vmatprep.subr.mxu0 0.0
    %166 = vmatpush1.msra.mxu0 0.0
    %167 = vmatprep.subr.mxu0 0.0
    %168 = vmatpush1.msra.mxu0 0.0
    %169 = vmatprep.subr.mxu0 0.0
    %170 = vmatpush1.msra.mxu0 0.0
    %171 = vmatprep.subr.mxu0 0.0
    %172 = vmatpush1.msra.mxu0 0.0
    %173 = vmatprep.subr.mxu0 0.0
    %174 = vmatpush1.msra.mxu0 0.0
    %175 = vmatprep.subr.mxu0 0.0
    %176 = vmatpush1.msra.mxu0 0.0
    %177 = vmatprep.subr.mxu0 0.0
    %178 = vmatpush1.msra.mxu0 0.0
    %179 = vmatprep.subr.mxu0 0.0
    %180 = vmatpush1.msra.mxu0 0.0
    %181 = vmatprep.subr.mxu0 0.0
    %182 = vmatpush1.msra.mxu0 0.0
    %183 = vmatprep.subr.mxu0 0.0
    %184 = vmatpush1.msra.mxu0 0.0
    %185 = vmatprep.mubr.f32.mxu0 0.0
    %186 = vmatmul.mubr.f32.gmra.mrb[0].mxu0 %v98
    %v187 = vpop.f32.mrb[0].mxu0
    %v188 = vadd.f32 %v79, %v187
    %v189 = vpop.f32.mrb[0].mxu0
    %v190 = vadd.f32 %v83, %v189
    %191 = vmatprep.mubr.f32.mxu0 0.0
    %192 = vmatmul.mubr.f32.gmra.mrb[0].mxu0 %v101
    %v193 = vpop.f32.mrb[0].mxu0
    %v194 = vadd.f32 %v79, %v193
    %v195 = vpop.f32.mrb[0].mxu0
    %v196 = vadd.f32 %v83, %v195
    %197 = vmatprep.mubr.f32.mxu0 0.0
    %198 = vmatmul.mubr.f32.gmra.mrb[0].mxu0 %v104
    %v199 = vpop.f32.mrb[0].mxu0
    %v200 = vadd.f32 %v79, %v199
    %v201 = vpop.f32.mrb[0].mxu0
    %v202 = vadd.f32 %v83, %v201
    %203 = vmatprep.mubr.f32.mxu0 0.0
    %204 = vmatmul.mubr.f32.gmra.mrb[0].mxu0 %v107
    %v205 = vpop.f32.mrb[0].mxu0
    %v206 = vadd.f32 %v79, %v205
    %v207 = vpop.f32.mrb[0].mxu0
    %v208 = vadd.f32 %v83, %v207
    %209 = vmatprep.mubr.f32.mxu0 0.0
    %210 = vmatmul.mubr.f32.gmra.mrb[0].mxu0 %v110
    %v211 = vpop.f32.mrb[0].mxu0
    %v212 = vadd.f32 %v79, %v211
    %v213 = vpop.f32.mrb[0].mxu0
    %v214 = vadd.f32 %v83, %v213
    %215 = vmatprep.mubr.f32.mxu0 0.0
    %216 = vmatmul.mubr.f32.gmra.mrb[0].mxu0 %v113
    %v217 = vpop.f32.mrb[0].mxu0
    %v218 = vadd.f32 %v79, %v217
    %v219 = vpop.f32.mrb[0].mxu0
    %v220 = vadd.f32 %v83, %v219
    %221 = vmatprep.mubr.f32.mxu0 0.0
    %222 = vmatmul.mubr.f32.gmra.mrb[0].mxu0 %v116
    %v223 = vpop.f32.mrb[0].mxu0
    %v224 = vadd.f32 %v79, %v223
    %v225 = vpop.f32.mrb[0].mxu0
    %v226 = vadd.f32 %v83, %v225
    %227 = vmatprep.mubr.f32.mxu0 0.0
    %228 = vmatmul.mubr.f32.gmra.mrb[0].mxu0 %v119
    %v229 = vpop.f32.mrb[0].mxu0
    %v230 = vadd.f32 %v79, %v229
    %v231 = vpop.f32.mrb[0].mxu0
    %v232 = vadd.f32 %v83, %v231
    %233 = vdwg.mxu0
    %234 = vmatprep.subr.mxu0 %v69
    %235 = vmatpush1.msra.mxu0 %v68
    %236 = vmatprep.subr.mxu0 %v73
    %237 = vmatpush1.msra.mxu0 %v72
    %238 = vmatprep.subr.mxu0 0.0
    %239 = vmatpush1.msra.mxu0 0.0
    %240 = vmatprep.subr.mxu0 0.0
    %241 = vmatpush1.msra.mxu0 0.0
    %242 = vmatprep.subr.mxu0 0.0
    %243 = vmatpush1.msra.mxu0 0.0
    %244 = vmatprep.subr.mxu0 0.0
    %245 = vmatpush1.msra.mxu0 0.0
    %246 = vmatprep.subr.mxu0 0.0
    %247 = vmatpush1.msra.mxu0 0.0
    %248 = vmatprep.subr.mxu0 0.0
    %249 = vmatpush1.msra.mxu0 0.0
    %250 = vmatprep.subr.mxu0 0.0
    %251 = vmatpush1.msra.mxu0 0.0
    %252 = vmatprep.subr.mxu0 0.0
    %253 = vmatpush1.msra.mxu0 0.0
    %254 = vmatprep.subr.mxu0 0.0
    %255 = vmatpush1.msra.mxu0 0.0
    %256 = vmatprep.subr.mxu0 0.0
    %257 = vmatpush1.msra.mxu0 0.0
    %258 = vmatprep.subr.mxu0 0.0
    %259 = vmatpush1.msra.mxu0 0.0
    %260 = vmatprep.subr.mxu0 0.0
    %261 = vmatpush1.msra.mxu0 0.0
    %262 = vmatprep.subr.mxu0 0.0
    %263 = vmatpush1.msra.mxu0 0.0
    %264 = vmatprep.subr.mxu0 0.0
    %265 = vmatpush1.msra.mxu0 0.0
    %266 = vmatprep.subr.mxu0 0.0
    %267 = vmatpush1.msra.mxu0 0.0
    %268 = vmatprep.subr.mxu0 0.0
    %269 = vmatpush1.msra.mxu0 0.0
    %270 = vmatprep.subr.mxu0 0.0
    %271 = vmatpush1.msra.mxu0 0.0
    %272 = vmatprep.subr.mxu0 0.0
    %273 = vmatpush1.msra.mxu0 0.0
    %274 = vmatprep.subr.mxu0 0.0
    %275 = vmatpush1.msra.mxu0 0.0
    %276 = vmatprep.subr.mxu0 0.0
    %277 = vmatpush1.msra.mxu0 0.0
    %278 = vmatprep.subr.mxu0 0.0
    %279 = vmatpush1.msra.mxu0 0.0
    %280 = vmatprep.subr.mxu0 0.0
    %281 = vmatpush1.msra.mxu0 0.0
    %282 = vmatprep.subr.mxu0 0.0
    %283 = vmatpush1.msra.mxu0 0.0
    %284 = vmatprep.subr.mxu0 0.0
    %285 = vmatpush1.msra.mxu0 0.0
    %286 = vmatprep.subr.mxu0 0.0
    %287 = vmatpush1.msra.mxu0 0.0
    %288 = vmatprep.subr.mxu0 0.0
    %289 = vmatpush1.msra.mxu0 0.0
    %290 = vmatprep.subr.mxu0 0.0
    %291 = vmatpush1.msra.mxu0 0.0
    %292 = vmatprep.subr.mxu0 0.0
    %293 = vmatpush1.msra.mxu0 0.0
    %294 = vmatprep.subr.mxu0 0.0
    %295 = vmatpush1.msra.mxu0 0.0
    %296 = vmatprep.subr.mxu0 0.0
    %297 = vmatpush1.msra.mxu0 0.0
    %298 = vmatprep.mubr.f32.mxu0 0.0
    %299 = vmatmul.mubr.f32.gmra.mrb[0].mxu0 %v98
    %v300 = vpop.f32.mrb[0].mxu0
    %v301 = vadd.f32 %v87, %v300
    %v302 = vpop.f32.mrb[0].mxu0
    %v303 = vadd.f32 %v91, %v302
    %304 = vmatprep.mubr.f32.mxu0 0.0
    %305 = vmatmul.mubr.f32.gmra.mrb[0].mxu0 %v101
    %v306 = vpop.f32.mrb[0].mxu0
    %v307 = vadd.f32 %v87, %v306
    %v308 = vpop.f32.mrb[0].mxu0
    %v309 = vadd.f32 %v91, %v308
    %310 = vmatprep.mubr.f32.mxu0 0.0
    %311 = vmatmul.mubr.f32.gmra.mrb[0].mxu0 %v104
    %v312 = vpop.f32.mrb[0].mxu0
    %v313 = vadd.f32 %v87, %v312
    %v314 = vpop.f32.mrb[0].mxu0
    %v315 = vadd.f32 %v91, %v314
    %316 = vmatprep.mubr.f32.mxu0 0.0
    %317 = vmatmul.mubr.f32.gmra.mrb[0].mxu0 %v107
    %v318 = vpop.f32.mrb[0].mxu0
    %v319 = vadd.f32 %v87, %v318
    %v320 = vpop.f32.mrb[0].mxu0
    %v321 = vadd.f32 %v91, %v320
    %322 = vmatprep.mubr.f32.mxu0 0.0
    %323 = vmatmul.mubr.f32.gmra.mrb[0].mxu0 %v110
    %v324 = vpop.f32.mrb[0].mxu0
    %v325 = vadd.f32 %v87, %v324
    %v326 = vpop.f32.mrb[0].mxu0
    %v327 = vadd.f32 %v91, %v326
    %328 = vmatprep.mubr.f32.mxu0 0.0
    %329 = vmatmul.mubr.f32.gmra.mrb[0].mxu0 %v113
    %v330 = vpop.f32.mrb[0].mxu0
    %v331 = vadd.f32 %v87, %v330
    %v332 = vpop.f32.mrb[0].mxu0
    %v333 = vadd.f32 %v91, %v332
    %334 = vmatprep.mubr.f32.mxu0 0.0
    %335 = vmatmul.mubr.f32.gmra.mrb[0].mxu0 %v116
    %v336 = vpop.f32.mrb[0].mxu0
    %v337 = vadd.f32 %v87, %v336
    %v338 = vpop.f32.mrb[0].mxu0
    %v339 = vadd.f32 %v91, %v338
    %340 = vmatprep.mubr.f32.mxu0 0.0
    %341 = vmatmul.mubr.f32.gmra.mrb[0].mxu0 %v119
    %v342 = vpop.f32.mrb[0].mxu0
    %v343 = vadd.f32 %v87, %v342
    %v344 = vpop.f32.mrb[0].mxu0
    %v345 = vadd.f32 %v91, %v344
    %346 = vdwg.mxu0
    %347 = vst [vmem:[#allocation4] sm:$0xff] %v188
    %348 = vst [vmem:[#allocation4 + $0x8] sm:$0xff] %v190
    %349 = vst [vmem:[#allocation4 + $0x10] sm:$0xff] %v301
    %350 = vst [vmem:[#allocation4 + $0x18] sm:$0xff] %v303
    %351 = vst [vmem:[#allocation4 + $0x20] sm:$0xff] %v194
    %352 = vst [vmem:[#allocation4 + $0x28] sm:$0xff] %v196
    %353 = vst [vmem:[#allocation4 + $0x30] sm:$0xff] %v307
    %354 = vst [vmem:[#allocation4 + $0x38] sm:$0xff] %v309
    %355 = vst [vmem:[#allocation4 + $0x40] sm:$0xff] %v200
    %356 = vst [vmem:[#allocation4 + $0x48] sm:$0xff] %v202
    %357 = vst [vmem:[#allocation4 + $0x50] sm:$0xff] %v313
    %358 = vst [vmem:[#allocation4 + $0x58] sm:$0xff] %v315
    %359 = vst [vmem:[#allocation4 + $0x60] sm:$0xff] %v206
    %360 = vst [vmem:[#allocation4 + $0x68] sm:$0xff] %v208
    %361 = vst [vmem:[#allocation4 + $0x70] sm:$0xff] %v319
    %362 = vst [vmem:[#allocation4 + $0x78] sm:$0xff] %v321
    %363 = vst [vmem:[#allocation4 + $0x80] sm:$0xff] %v212
    %364 = vst [vmem:[#allocation4 + $0x88] sm:$0xff] %v214
    %365 = vst [vmem:[#allocation4 + $0x90] sm:$0xff] %v325
    %366 = vst [vmem:[#allocation4 + $0x98] sm:$0xff] %v327
    %367 = vst [vmem:[#allocation4 + $0xa0] sm:$0xff] %v218
    %368 = vst [vmem:[#allocation4 + $0xa8] sm:$0xff] %v220
    %369 = vst [vmem:[#allocation4 + $0xb0] sm:$0xff] %v331
    %370 = vst [vmem:[#allocation4 + $0xb8] sm:$0xff] %v333
    %371 = vst [vmem:[#allocation4 + $0xc0] sm:$0xff] %v224
    %372 = vst [vmem:[#allocation4 + $0xc8] sm:$0xff] %v226
    %373 = vst [vmem:[#allocation4 + $0xd0] sm:$0xff] %v337
    %374 = vst [vmem:[#allocation4 + $0xd8] sm:$0xff] %v339
    %375 = vst [vmem:[#allocation4 + $0xe0] sm:$0xff] %v230
    %376 = vst [vmem:[#allocation4 + $0xe8] sm:$0xff] %v232
    %377 = vst [vmem:[#allocation4 + $0xf0] sm:$0xff] %v343
    %378 = vst [vmem:[#allocation4 + $0xf8] sm:$0xff] %v345
    %v379 = vld [vmem:[#allocation5] sm:$0xff]
    %v380 = vld [vmem:[#allocation5 + $0x8] sm:$0xff]
    %v381 = vld [vmem:[#allocation5 + $0x10] sm:$0xff]
    %v382 = vld [vmem:[#allocation5 + $0x18] sm:$0xff]
    %v383 = vld [vmem:[#allocation5 + $0x20] sm:$0xff]
    %v384 = vld [vmem:[#allocation5 + $0x28] sm:$0xff]
    %v385 = vld [vmem:[#allocation5 + $0x30] sm:$0xff]
    %v386 = vld [vmem:[#allocation5 + $0x38] sm:$0xff]
    %v387 = vld [vmem:[#allocation5 + $0x40] sm:$0xff]
    %v388 = vld [vmem:[#allocation5 + $0x48] sm:$0xff]
    %v389 = vld [vmem:[#allocation5 + $0x50] sm:$0xff]
    %v390 = vld [vmem:[#allocation5 + $0x58] sm:$0xff]
    %v391 = vld [vmem:[#allocation5 + $0x60] sm:$0xff]
    %v392 = vld [vmem:[#allocation5 + $0x68] sm:$0xff]
    %v393 = vld [vmem:[#allocation5 + $0x70] sm:$0xff]
    %v394 = vld [vmem:[#allocation5 + $0x78] sm:$0xff]
    %v395 = vld [vmem:[#allocation5 + $0x80] sm:$0xff]
    %v396 = vld [vmem:[#allocation5 + $0x88] sm:$0xff]
    %v397 = vld [vmem:[#allocation5 + $0x90] sm:$0xff]
    %v398 = vld [vmem:[#allocation5 + $0x98] sm:$0xff]
    %v399 = vld [vmem:[#allocation5 + $0xa0] sm:$0xff]
    %v400 = vld [vmem:[#allocation5 + $0xa8] sm:$0xff]
    %v401 = vld [vmem:[#allocation5 + $0xb0] sm:$0xff]
    %v402 = vld [vmem:[#allocation5 + $0xb8] sm:$0xff]
    %v403 = vld [vmem:[#allocation5 + $0xc0] sm:$0xff]
    %v404 = vld [vmem:[#allocation5 + $0xc8] sm:$0xff]
    %v405 = vld [vmem:[#allocation5 + $0xd0] sm:$0xff]
    %v406 = vld [vmem:[#allocation5 + $0xd8] sm:$0xff]
    %v407 = vld [vmem:[#allocation5 + $0xe0] sm:$0xff]
    %v408 = vld [vmem:[#allocation5 + $0xe8] sm:$0xff]
    %v409 = vld [vmem:[#allocation5 + $0xf0] sm:$0xff]
    %v410 = vld [vmem:[#allocation5 + $0xf8] sm:$0xff]
    %v411 = vld [vmem:[#allocation5 + $0x100] sm:$0xff]
    %v412 = vld [vmem:[#allocation5 + $0x108] sm:$0xff]
    %v413 = vld [vmem:[#allocation5 + $0x110] sm:$0xff]
    %v414 = vld [vmem:[#allocation5 + $0x118] sm:$0xff]
    %v415 = vld [vmem:[#allocation5 + $0x120] sm:$0xff]
    %v416 = vld [vmem:[#allocation5 + $0x128] sm:$0xff]
    %v417 = vld [vmem:[#allocation5 + $0x130] sm:$0xff]
    %v418 = vld [vmem:[#allocation5 + $0x138] sm:$0xff]
    %v419 = vld [vmem:[#allocation5 + $0x140] sm:$0xff]
    %v420 = vld [vmem:[#allocation5 + $0x148] sm:$0xff]
    %v421 = vld [vmem:[#allocation5 + $0x150] sm:$0xff]
    %v422 = vld [vmem:[#allocation5 + $0x158] sm:$0xff]
    %v423 = vld [vmem:[#allocation5 + $0x160] sm:$0xff]
    %v424 = vld [vmem:[#allocation5 + $0x168] sm:$0xff]
    %v425 = vld [vmem:[#allocation5 + $0x170] sm:$0xff]
    %v426 = vld [vmem:[#allocation5 + $0x178] sm:$0xff]
    %v427 = vld [vmem:[#allocation5 + $0x180] sm:$0xff]
    %v428 = vld [vmem:[#allocation5 + $0x188] sm:$0xff]
    %v429 = vld [vmem:[#allocation5 + $0x190] sm:$0xff]
    %v430 = vld [vmem:[#allocation5 + $0x198] sm:$0xff]
    %v431 = vld [vmem:[#allocation5 + $0x1a0] sm:$0xff]
    %v432 = vld [vmem:[#allocation5 + $0x1a8] sm:$0xff]
    %v433 = vld [vmem:[#allocation5 + $0x1b0] sm:$0xff]
    %v434 = vld [vmem:[#allocation5 + $0x1b8] sm:$0xff]
    %v435 = vld [vmem:[#allocation5 + $0x1c0] sm:$0xff]
    %v436 = vld [vmem:[#allocation5 + $0x1c8] sm:$0xff]
    %v437 = vld [vmem:[#allocation5 + $0x1d0] sm:$0xff]
    %v438 = vld [vmem:[#allocation5 + $0x1d8] sm:$0xff]
    %v439 = vld [vmem:[#allocation5 + $0x1e0] sm:$0xff]
    %v440 = vld [vmem:[#allocation5 + $0x1e8] sm:$0xff]
    %v441 = vld [vmem:[#allocation5 + $0x1f0] sm:$0xff]
    %v442 = vld [vmem:[#allocation5 + $0x1f8] sm:$0xff]
    %v443 = vld [vmem:[#allocation2] sm:$0xff]
    %v444 = vld [vmem:[#allocation3] sm:$0xff]
    %s445 = smul.u32 0, 4
    %s446 = smul.addr %s445, 8
    %s447 = scalar_lea.vmem [#allocation4], %s446
    %v448 = vld [vmem:[%s447] sm:$0xff]
    %v449 = vld [vmem:[%s447 + $0x8] sm:$0xff]
    %v450 = vld [vmem:[%s447 + $0x10] sm:$0xff]
    %v451 = vld [vmem:[%s447 + $0x18] sm:$0xff]
    %452 = vmatprep.subr.mxu0 %v380
    %453 = vmatpush1.msra.mxu0 %v379
    %454 = vmatprep.subr.mxu0 %v384
    %455 = vmatpush1.msra.mxu0 %v383
    %456 = vmatprep.subr.mxu0 %v388
    %457 = vmatpush1.msra.mxu0 %v387
    %458 = vmatprep.subr.mxu0 %v392
    %459 = vmatpush1.msra.mxu0 %v391
    %460 = vmatprep.subr.mxu0 %v396
    %461 = vmatpush1.msra.mxu0 %v395
    %462 = vmatprep.subr.mxu0 %v400
    %463 = vmatpush1.msra.mxu0 %v399
    %464 = vmatprep.subr.mxu0 %v404
    %465 = vmatpush1.msra.mxu0 %v403
    %466 = vmatprep.subr.mxu0 %v408
    %467 = vmatpush1.msra.mxu0 %v407
    %468 = vmatprep.subr.mxu0 %v412
    %469 = vmatpush1.msra.mxu0 %v411
    %470 = vmatprep.subr.mxu0 %v416
    %471 = vmatpush1.msra.mxu0 %v415
    %472 = vmatprep.subr.mxu0 %v420
    %473 = vmatpush1.msra.mxu0 %v419
    %474 = vmatprep.subr.mxu0 %v424
    %475 = vmatpush1.msra.mxu0 %v423
    %476 = vmatprep.subr.mxu0 %v428
    %477 = vmatpush1.msra.mxu0 %v427
    %478 = vmatprep.subr.mxu0 %v432
    %479 = vmatpush1.msra.mxu0 %v431
    %480 = vmatprep.subr.mxu0 %v436
    %481 = vmatpush1.msra.mxu0 %v435
    %482 = vmatprep.subr.mxu0 %v440
    %483 = vmatpush1.msra.mxu0 %v439
    %484 = vmatprep.subr.mxu0 0.0
    %485 = vmatpush1.msra.mxu0 0.0
    %486 = vmatprep.subr.mxu0 0.0
    %487 = vmatpush1.msra.mxu0 0.0
    %488 = vmatprep.subr.mxu0 0.0
    %489 = vmatpush1.msra.mxu0 0.0
    %490 = vmatprep.subr.mxu0 0.0
    %491 = vmatpush1.msra.mxu0 0.0
    %492 = vmatprep.subr.mxu0 0.0
    %493 = vmatpush1.msra.mxu0 0.0
    %494 = vmatprep.subr.mxu0 0.0
    %495 = vmatpush1.msra.mxu0 0.0
    %496 = vmatprep.subr.mxu0 0.0
    %497 = vmatpush1.msra.mxu0 0.0
    %498 = vmatprep.subr.mxu0 0.0
    %499 = vmatpush1.msra.mxu0 0.0
    %500 = vmatprep.subr.mxu0 0.0
    %501 = vmatpush1.msra.mxu0 0.0
    %502 = vmatprep.subr.mxu0 0.0
    %503 = vmatpush1.msra.mxu0 0.0
    %504 = vmatprep.subr.mxu0 0.0
    %505 = vmatpush1.msra.mxu0 0.0
    %506 = vmatprep.subr.mxu0 0.0
    %507 = vmatpush1.msra.mxu0 0.0
    %508 = vmatprep.subr.mxu0 0.0
    %509 = vmatpush1.msra.mxu0 0.0
    %510 = vmatprep.subr.mxu0 0.0
    %511 = vmatpush1.msra.mxu0 0.0
    %512 = vmatprep.subr.mxu0 0.0
    %513 = vmatpush1.msra.mxu0 0.0
    %514 = vmatprep.subr.mxu0 0.0
    %515 = vmatpush1.msra.mxu0 0.0
    %516 = vmatprep.mubr.f32.mxu0 0.0
    %517 = vmatmul.mubr.f32.gmra.mrb[0].mxu0 %v443
    %v518 = vpop.f32.mrb[0].mxu0
    %v519 = vadd.f32 0.0, %v518
    %v520 = vpop.f32.mrb[0].mxu0
    %v521 = vadd.f32 0.0, %v520
    %522 = vdwg.mxu0
    %523 = vmatprep.subr.mxu0 %v382
    %524 = vmatpush1.msra.mxu0 %v381
    %525 = vmatprep.subr.mxu0 %v386
    %526 = vmatpush1.msra.mxu0 %v385
    %527 = vmatprep.subr.mxu0 %v390
    %528 = vmatpush1.msra.mxu0 %v389
    %529 = vmatprep.subr.mxu0 %v394
    %530 = vmatpush1.msra.mxu0 %v393
    %531 = vmatprep.subr.mxu0 %v398
    %532 = vmatpush1.msra.mxu0 %v397
    %533 = vmatprep.subr.mxu0 %v402
    %534 = vmatpush1.msra.mxu0 %v401
    %535 = vmatprep.subr.mxu0 %v406
    %536 = vmatpush1.msra.mxu0 %v405
    %537 = vmatprep.subr.mxu0 %v410
    %538 = vmatpush1.msra.mxu0 %v409
    %539 = vmatprep.subr.mxu0 %v414
    %540 = vmatpush1.msra.mxu0 %v413
    %541 = vmatprep.subr.mxu0 %v418
    %542 = vmatpush1.msra.mxu0 %v417
    %543 = vmatprep.subr.mxu0 %v422
    %544 = vmatpush1.msra.mxu0 %v421
    %545 = vmatprep.subr.mxu0 %v426
    %546 = vmatpush1.msra.mxu0 %v425
    %547 = vmatprep.subr.mxu0 %v430
    %548 = vmatpush1.msra.mxu0 %v429
    %549 = vmatprep.subr.mxu0 %v434
    %550 = vmatpush1.msra.mxu0 %v433
    %551 = vmatprep.subr.mxu0 %v438
    %552 = vmatpush1.msra.mxu0 %v437
    %553 = vmatprep.subr.mxu0 %v442
    %554 = vmatpush1.msra.mxu0 %v441
    %555 = vmatprep.subr.mxu0 0.0
    %556 = vmatpush1.msra.mxu0 0.0
    %557 = vmatprep.subr.mxu0 0.0
    %558 = vmatpush1.msra.mxu0 0.0
    %559 = vmatprep.subr.mxu0 0.0
    %560 = vmatpush1.msra.mxu0 0.0
    %561 = vmatprep.subr.mxu0 0.0
    %562 = vmatpush1.msra.mxu0 0.0
    %563 = vmatprep.subr.mxu0 0.0
    %564 = vmatpush1.msra.mxu0 0.0
    %565 = vmatprep.subr.mxu0 0.0
    %566 = vmatpush1.msra.mxu0 0.0
    %567 = vmatprep.subr.mxu0 0.0
    %568 = vmatpush1.msra.mxu0 0.0
    %569 = vmatprep.subr.mxu0 0.0
    %570 = vmatpush1.msra.mxu0 0.0
    %571 = vmatprep.subr.mxu0 0.0
    %572 = vmatpush1.msra.mxu0 0.0
    %573 = vmatprep.subr.mxu0 0.0
    %574 = vmatpush1.msra.mxu0 0.0
    %575 = vmatprep.subr.mxu0 0.0
    %576 = vmatpush1.msra.mxu0 0.0
    %577 = vmatprep.subr.mxu0 0.0
    %578 = vmatpush1.msra.mxu0 0.0
    %579 = vmatprep.subr.mxu0 0.0
    %580 = vmatpush1.msra.mxu0 0.0
    %581 = vmatprep.subr.mxu0 0.0
    %582 = vmatpush1.msra.mxu0 0.0
    %583 = vmatprep.subr.mxu0 0.0
    %584 = vmatpush1.msra.mxu0 0.0
    %585 = vmatprep.subr.mxu0 0.0
    %586 = vmatpush1.msra.mxu0 0.0
    %587 = vmatprep.mubr.f32.mxu0 0.0
    %588 = vmatmul.mubr.f32.gmra.mrb[0].mxu0 %v443
    %v589 = vpop.f32.mrb[0].mxu0
    %v590 = vadd.f32 0.0, %v589
    %v591 = vpop.f32.mrb[0].mxu0
    %v592 = vadd.f32 0.0, %v591
    %593 = vdwg.mxu0
    %v594 = vadd.f32 %v448, %v519
    %v595 = vadd.f32 %v449, %v521
    %v596 = vadd.f32 %v450, %v590
    %v597 = vadd.f32 %v451, %v592
    %v598 = vxor.u32 %v594, 2147483648
    %v599 = vmul.f32 %v598, 1.442695
    %v600 = vpow.pop %v599
    %v601 = vadd.f32 %v600, 1.0
    %v602 = vrcp.pop %v601
    %v603 = vmul.f32 1.0, %v602
    %v604 = vxor.u32 %v595, 2147483648
    %v605 = vmul.f32 %v604, 1.442695
    %v606 = vpow.pop %v605
    %v607 = vadd.f32 %v606, 1.0
    %v608 = vrcp.pop %v607
    %v609 = vmul.f32 1.0, %v608
    %v610 = vtanh.pop %v596
    %v611 = vxor.u32 %v597, 2147483648
    %v612 = vmul.f32 %v611, 1.442695
    %v613 = vpow.pop %v612
    %v614 = vadd.f32 %v613, 1.0
    %v615 = vrcp.pop %v614
    %v616 = vmul.f32 1.0, %v615
    %v617 = vmul.f32 %v609, %v444
    %v618 = vmul.f32 %v603, %v610
    %v619 = vadd.f32 %v617, %v618
    %v620 = vtanh.pop %v619
    %v621 = vmul.f32 %v616, %v620
    %s622 = smul.u32 1, 4
    %s623 = smul.addr %s622, 8
    %s624 = scalar_lea.vmem [#allocation4], %s623
    %v625 = vld [vmem:[%s624] sm:$0xff]
    %v626 = vld [vmem:[%s624 + $0x8] sm:$0xff]
    %v627 = vld [vmem:[%s624 + $0x10] sm:$0xff]
    %v628 = vld [vmem:[%s624 + $0x18] sm:$0xff]
    %629 = vmatprep.subr.mxu0 %v380
    %630 = vmatpush1.msra.mxu0 %v379
    %631 = vmatprep.subr.mxu0 %v384
    %632 = vmatpush1.msra.mxu0 %v383
    %633 = vmatprep.subr.mxu0 %v388
    %634 = vmatpush1.msra.mxu0 %v387
    %635 = vmatprep.subr.mxu0 %v392
    %636 = vmatpush1.msra.mxu0 %v391
    %637 = vmatprep.subr.mxu0 %v396
    %638 = vmatpush1.msra.mxu0 %v395
    %639 = vmatprep.subr.mxu0 %v400
    %640 = vmatpush1.msra.mxu0 %v399
    %641 = vmatprep.subr.mxu0 %v404
    %642 = vmatpush1.msra.mxu0 %v403
    %643 = vmatprep.subr.mxu0 %v408
    %644 = vmatpush1.msra.mxu0 %v407
    %645 = vmatprep.subr.mxu0 %v412
    %646 = vmatpush1.msra.mxu0 %v411
    %647 = vmatprep.subr.mxu0 %v416
    %648 = vmatpush1.msra.mxu0 %v415
    %649 = vmatprep.subr.mxu0 %v420
    %650 = vmatpush1.msra.mxu0 %v419
    %651 = vmatprep.subr.mxu0 %v424
    %652 = vmatpush1.msra.mxu0 %v423
    %653 = vmatprep.subr.mxu0 %v428
    %654 = vmatpush1.msra.mxu0 %v427
    %655 = vmatprep.subr.mxu0 %v432
    %656 = vmatpush1.msra.mxu0 %v431
    %657 = vmatprep.subr.mxu0 %v436
    %658 = vmatpush1.msra.mxu0 %v435
    %659 = vmatprep.subr.mxu0 %v440
    %660 = vmatpush1.msra.mxu0 %v439
    %661 = vmatprep.subr.mxu0 0.0
    %662 = vmatpush1.msra.mxu0 0.0
    %663 = vmatprep.subr.mxu0 0.0
    %664 = vmatpush1.msra.mxu0 0.0
    %665 = vmatprep.subr.mxu0 0.0
    %666 = vmatpush1.msra.mxu0 0.0
    %667 = vmatprep.subr.mxu0 0.0
    %668 = vmatpush1.msra.mxu0 0.0
    %669 = vmatprep.subr.mxu0 0.0
    %670 = vmatpush1.msra.mxu0 0.0
    %671 = vmatprep.subr.mxu0 0.0
    %672 = vmatpush1.msra.mxu0 0.0
    %673 = vmatprep.subr.mxu0 0.0
    %674 = vmatpush1.msra.mxu0 0.0
    %675 = vmatprep.subr.mxu0 0.0
    %676 = vmatpush1.msra.mxu0 0.0
    %677 = vmatprep.subr.mxu0 0.0
    %678 = vmatpush1.msra.mxu0 0.0
    %679 = vmatprep.subr.mxu0 0.0
    %680 = vmatpush1.msra.mxu0 0.0
    %681 = vmatprep.subr.mxu0 0.0
    %682 = vmatpush1.msra.mxu0 0.0
    %683 = vmatprep.subr.mxu0 0.0
    %684 = vmatpush1.msra.mxu0 0.0
    %685 = vmatprep.subr.mxu0 0.0
    %686 = vmatpush1.msra.mxu0 0.0
    %687 = vmatprep.subr.mxu0 0.0
    %688 = vmatpush1.msra.mxu0 0.0
    %689 = vmatprep.subr.mxu0 0.0
    %690 = vmatpush1.msra.mxu0 0.0
    %691 = vmatprep.subr.mxu0 0.0
    %692 = vmatpush1.msra.mxu0 0.0
    %693 = vmatprep.mubr.f32.mxu0 0.0
    %694 = vmatmul.mubr.f32.gmra.mrb[0].mxu0 %v621
    %v695 = vpop.f32.mrb[0].mxu0
    %v696 = vadd.f32 0.0, %v695
    %v697 = vpop.f32.mrb[0].mxu0
    %v698 = vadd.f32 0.0, %v697
    %699 = vdwg.mxu0
    %700 = vmatprep.subr.mxu0 %v382
    %701 = vmatpush1.msra.mxu0 %v381
    %702 = vmatprep.subr.mxu0 %v386
    %703 = vmatpush1.msra.mxu0 %v385
    %704 = vmatprep.subr.mxu0 %v390
    %705 = vmatpush1.msra.mxu0 %v389
    %706 = vmatprep.subr.mxu0 %v394
    %707 = vmatpush1.msra.mxu0 %v393
    %708 = vmatprep.subr.mxu0 %v398
    %709 = vmatpush1.msra.mxu0 %v397
    %710 = vmatprep.subr.mxu0 %v402
    %711 = vmatpush1.msra.mxu0 %v401
    %712 = vmatprep.subr.mxu0 %v406
    %713 = vmatpush1.msra.mxu0 %v405
    %714 = vmatprep.subr.mxu0 %v410
    %715 = vmatpush1.msra.mxu0 %v409
    %716 = vmatprep.subr.mxu0 %v414
    %717 = vmatpush1.msra.mxu0 %v413
    %718 = vmatprep.subr.mxu0 %v418
    %719 = vmatpush1.msra.mxu0 %v417
    %720 = vmatprep.subr.mxu0 %v422
    %721 = vmatpush1.msra.mxu0 %v421
    %722 = vmatprep.subr.mxu0 %v426
    %723 = vmatpush1.msra.mxu0 %v425
    %724 = vmatprep.subr.mxu0 %v430
    %725 = vmatpush1.msra.mxu0 %v429
    %726 = vmatprep.subr.mxu0 %v434
    %727 = vmatpush1.msra.mxu0 %v433
    %728 = vmatprep.subr.mxu0 %v438
    %729 = vmatpush1.msra.mxu0 %v437
    %730 = vmatprep.subr.mxu0 %v442
    %731 = vmatpush1.msra.mxu0 %v441
    %732 = vmatprep.subr.mxu0 0.0
    %733 = vmatpush1.msra.mxu0 0.0
    %734 = vmatprep.subr.mxu0 0.0
    %735 = vmatpush1.msra.mxu0 0.0
    %736 = vmatprep.subr.mxu0 0.0
    %737 = vmatpush1.msra.mxu0 0.0
    %738 = vmatprep.subr.mxu0 0.0
    %739 = vmatpush1.msra.mxu0 0.0
    %740 = vmatprep.subr.mxu0 0.0
    %741 = vmatpush1.msra.mxu0 0.0
    %742 = vmatprep.subr.mxu0 0.0
    %743 = vmatpush1.msra.mxu0 0.0
    %744 = vmatprep.subr.mxu0 0.0
    %745 = vmatpush1.msra.mxu0 0.0
    %746 = vmatprep.subr.mxu0 0.0
    %747 = vmatpush1.msra.mxu0 0.0
    %748 = vmatprep.subr.mxu0 0.0
    %749 = vmatpush1.msra.mxu0 0.0
    %750 = vmatprep.subr.mxu0 0.0
    %751 = vmatpush1.msra.mxu0 0.0
    %752 = vmatprep.subr.mxu0 0.0
    %753 = vmatpush1.msra.mxu0 0.0
    %754 = vmatprep.subr.mxu0 0.0
    %755 = vmatpush1.msra.mxu0 0.0
    %756 = vmatprep.subr.mxu0 0.0
    %757 = vmatpush1.msra.mxu0 0.0
    %758 = vmatprep.subr.mxu0 0.0
    %759 = vmatpush1.msra.mxu0 0.0
    %760 = vmatprep.subr.mxu0 0.0
    %761 = vmatpush1.msra.mxu0 0.0
    %762 = vmatprep.subr.mxu0 0.0
    %763 = vmatpush1.msra.mxu0 0.0
    %764 = vmatprep.mubr.f32.mxu0 0.0
    %765 = vmatmul.mubr.f32.gmra.mrb[0].mxu0 %v621
    %v766 = vpop.f32.mrb[0].mxu0
    %v767 = vadd.f32 0.0, %v766
    %v768 = vpop.f32.mrb[0].mxu0
    %v769 = vadd.f32 0.0, %v768
    %770 = vdwg.mxu0
    %v771 = vadd.f32 %v625, %v696
    %v772 = vadd.f32 %v626, %v698
    %v773 = vadd.f32 %v627, %v767
    %v774 = vadd.f32 %v628, %v769
    %v775 = vxor.u32 %v771, 2147483648
    %v776 = vmul.f32 %v775, 1.442695
    %v777 = vpow.pop %v776
    %v778 = vadd.f32 %v777, 1.0
    %v779 = vrcp.pop %v778
    %v780 = vmul.f32 1.0, %v779
    %v781 = vxor.u32 %v772, 2147483648
    %v782 = vmul.f32 %v781, 1.442695
    %v783 = vpow.pop %v782
    %v784 = vadd.f32 %v783, 1.0
    %v785 = vrcp.pop %v784
    %v786 = vmul.f32 1.0, %v785
    %v787 = vtanh.pop %v773
    %v788 = vxor.u32 %v774, 2147483648
    %v789 = vmul.f32 %v788, 1.442695
    %v790 = vpow.pop %v789
    %v791 = vadd.f32 %v790, 1.0
    %v792 = vrcp.pop %v791
    %v793 = vmul.f32 1.0, %v792
    %v794 = vmul.f32 %v786, %v619
    %v795 = vmul.f32 %v780, %v787
    %v796 = vadd.f32 %v794, %v795
    %v797 = vtanh.pop %v796
    %v798 = vmul.f32 %v793, %v797
    %s799 = smul.u32 2, 4
    %s800 = smul.addr %s799, 8
    %s801 = scalar_lea.vmem [#allocation4], %s800
    %v802 = vld [vmem:[%s801] sm:$0xff]
    %v803 = vld [vmem:[%s801 + $0x8] sm:$0xff]
    %v804 = vld [vmem:[%s801 + $0x10] sm:$0xff]
    %v805 = vld [vmem:[%s801 + $0x18] sm:$0xff]
    %806 = vmatprep.subr.mxu0 %v380
    %807 = vmatpush1.msra.mxu0 %v379
    %808 = vmatprep.subr.mxu0 %v384
    %809 = vmatpush1.msra.mxu0 %v383
    %810 = vmatprep.subr.mxu0 %v388
    %811 = vmatpush1.msra.mxu0 %v387
    %812 = vmatprep.subr.mxu0 %v392
    %813 = vmatpush1.msra.mxu0 %v391
    %814 = vmatprep.subr.mxu0 %v396
    %815 = vmatpush1.msra.mxu0 %v395
    %816 = vmatprep.subr.mxu0 %v400
    %817 = vmatpush1.msra.mxu0 %v399
    %818 = vmatprep.subr.mxu0 %v404
    %819 = vmatpush1.msra.mxu0 %v403
    %820 = vmatprep.subr.mxu0 %v408
    %821 = vmatpush1.msra.mxu0 %v407
    %822 = vmatprep.subr.mxu0 %v412
    %823 = vmatpush1.msra.mxu0 %v411
    %824 = vmatprep.subr.mxu0 %v416
    %825 = vmatpush1.msra.mxu0 %v415
    %826 = vmatprep.subr.mxu0 %v420
    %827 = vmatpush1.msra.mxu0 %v419
    %828 = vmatprep.subr.mxu0 %v424
    %829 = vmatpush1.msra.mxu0 %v423
    %830 = vmatprep.subr.mxu0 %v428
    %831 = vmatpush1.msra.mxu0 %v427
    %832 = vmatprep.subr.mxu0 %v432
    %833 = vmatpush1.msra.mxu0 %v431
    %834 = vmatprep.subr.mxu0 %v436
    %835 = vmatpush1.msra.mxu0 %v435
    %836 = vmatprep.subr.mxu0 %v440
    %837 = vmatpush1.msra.mxu0 %v439
    %838 = vmatprep.subr.mxu0 0.0
    %839 = vmatpush1.msra.mxu0 0.0
    %840 = vmatprep.subr.mxu0 0.0
    %841 = vmatpush1.msra.mxu0 0.0
    %842 = vmatprep.subr.mxu0 0.0
    %843 = vmatpush1.msra.mxu0 0.0
    %844 = vmatprep.subr.mxu0 0.0
    %845 = vmatpush1.msra.mxu0 0.0
    %846 = vmatprep.subr.mxu0 0.0
    %847 = vmatpush1.msra.mxu0 0.0
    %848 = vmatprep.subr.mxu0 0.0
    %849 = vmatpush1.msra.mxu0 0.0
    %850 = vmatprep.subr.mxu0 0.0
    %851 = vmatpush1.msra.mxu0 0.0
    %852 = vmatprep.subr.mxu0 0.0
    %853 = vmatpush1.msra.mxu0 0.0
    %854 = vmatprep.subr.mxu0 0.0
    %855 = vmatpush1.msra.mxu0 0.0
    %856 = vmatprep.subr.mxu0 0.0
    %857 = vmatpush1.msra.mxu0 0.0
    %858 = vmatprep.subr.mxu0 0.0
    %859 = vmatpush1.msra.mxu0 0.0
    %860 = vmatprep.subr.mxu0 0.0
    %861 = vmatpush1.msra.mxu0 0.0
    %862 = vmatprep.subr.mxu0 0.0
    %863 = vmatpush1.msra.mxu0 0.0
    %864 = vmatprep.subr.mxu0 0.0
    %865 = vmatpush1.msra.mxu0 0.0
    %866 = vmatprep.subr.mxu0 0.0
    %867 = vmatpush1.msra.mxu0 0.0
    %868 = vmatprep.subr.mxu0 0.0
    %869 = vmatpush1.msra.mxu0 0.0
    %870 = vmatprep.mubr.f32.mxu0 0.0
    %871 = vmatmul.mubr.f32.gmra.mrb[0].mxu0 %v798
    %v872 = vpop.f32.mrb[0].mxu0
    %v873 = vadd.f32 0.0, %v872
    %v874 = vpop.f32.mrb[0].mxu0
    %v875 = vadd.f32 0.0, %v874
    %876 = vdwg.mxu0
    %877 = vmatprep.subr.mxu0 %v382
    %878 = vmatpush1.msra.mxu0 %v381
    %879 = vmatprep.subr.mxu0 %v386
    %880 = vmatpush1.msra.mxu0 %v385
    %881 = vmatprep.subr.mxu0 %v390
    %882 = vmatpush1.msra.mxu0 %v389
    %883 = vmatprep.subr.mxu0 %v394
    %884 = vmatpush1.msra.mxu0 %v393
    %885 = vmatprep.subr.mxu0 %v398
    %886 = vmatpush1.msra.mxu0 %v397
    %887 = vmatprep.subr.mxu0 %v402
    %888 = vmatpush1.msra.mxu0 %v401
    %889 = vmatprep.subr.mxu0 %v406
    %890 = vmatpush1.msra.mxu0 %v405
    %891 = vmatprep.subr.mxu0 %v410
    %892 = vmatpush1.msra.mxu0 %v409
    %893 = vmatprep.subr.mxu0 %v414
    %894 = vmatpush1.msra.mxu0 %v413
    %895 = vmatprep.subr.mxu0 %v418
    %896 = vmatpush1.msra.mxu0 %v417
    %897 = vmatprep.subr.mxu0 %v422
    %898 = vmatpush1.msra.mxu0 %v421
    %899 = vmatprep.subr.mxu0 %v426
    %900 = vmatpush1.msra.mxu0 %v425
    %901 = vmatprep.subr.mxu0 %v430
    %902 = vmatpush1.msra.mxu0 %v429
    %903 = vmatprep.subr.mxu0 %v434
    %904 = vmatpush1.msra.mxu0 %v433
    %905 = vmatprep.subr.mxu0 %v438
    %906 = vmatpush1.msra.mxu0 %v437
    %907 = vmatprep.subr.mxu0 %v442
    %908 = vmatpush1.msra.mxu0 %v441
    %909 = vmatprep.subr.mxu0 0.0
    %910 = vmatpush1.msra.mxu0 0.0
    %911 = vmatprep.subr.mxu0 0.0
    %912 = vmatpush1.msra.mxu0 0.0
    %913 = vmatprep.subr.mxu0 0.0
    %914 = vmatpush1.msra.mxu0 0.0
    %915 = vmatprep.subr.mxu0 0.0
    %916 = vmatpush1.msra.mxu0 0.0
    %917 = vmatprep.subr.mxu0 0.0
    %918 = vmatpush1.msra.mxu0 0.0
    %919 = vmatprep.subr.mxu0 0.0
    %920 = vmatpush1.msra.mxu0 0.0
    %921 = vmatprep.subr.mxu0 0.0
    %922 = vmatpush1.msra.mxu0 0.0
    %923 = vmatprep.subr.mxu0 0.0
    %924 = vmatpush1.msra.mxu0 0.0
    %925 = vmatprep.subr.mxu0 0.0
    %926 = vmatpush1.msra.mxu0 0.0
    %927 = vmatprep.subr.mxu0 0.0
    %928 = vmatpush1.msra.mxu0 0.0
    %929 = vmatprep.subr.mxu0 0.0
    %930 = vmatpush1.msra.mxu0 0.0
    %931 = vmatprep.subr.mxu0 0.0
    %932 = vmatpush1.msra.mxu0 0.0
    %933 = vmatprep.subr.mxu0 0.0
    %934 = vmatpush1.msra.mxu0 0.0
    %935 = vmatprep.subr.mxu0 0.0
    %936 = vmatpush1.msra.mxu0 0.0
    %937 = vmatprep.subr.mxu0 0.0
    %938 = vmatpush1.msra.mxu0 0.0
    %939 = vmatprep.subr.mxu0 0.0
    %940 = vmatpush1.msra.mxu0 0.0
    %941 = vmatprep.mubr.f32.mxu0 0.0
    %942 = vmatmul.mubr.f32.gmra.mrb[0].mxu0 %v798
    %v943 = vpop.f32.mrb[0].mxu0
    %v944 = vadd.f32 0.0, %v943
    %v945 = vpop.f32.mrb[0].mxu0
    %v946 = vadd.f32 0.0, %v945
    %947 = vdwg.mxu0
    %v948 = vadd.f32 %v802, %v873
    %v949 = vadd.f32 %v803, %v875
    %v950 = vadd.f32 %v804, %v944
    %v951 = vadd.f32 %v805, %v946
    %v952 = vxor.u32 %v948, 2147483648
    %v953 = vmul.f32 %v952, 1.442695
    %v954 = vpow.pop %v953
    %v955 = vadd.f32 %v954, 1.0
    %v956 = vrcp.pop %v955
    %v957 = vmul.f32 1.0, %v956
    %v958 = vxor.u32 %v949, 2147483648
    %v959 = vmul.f32 %v958, 1.442695
    %v960 = vpow.pop %v959
    %v961 = vadd.f32 %v960, 1.0
    %v962 = vrcp.pop %v961
    %v963 = vmul.f32 1.0, %v962
    %v964 = vtanh.pop %v950
    %v965 = vxor.u32 %v951, 2147483648
    %v966 = vmul.f32 %v965, 1.442695
    %v967 = vpow.pop %v966
    %v968 = vadd.f32 %v967, 1.0
    %v969 = vrcp.pop %v968
    %v970 = vmul.f32 1.0, %v969
    %v971 = vmul.f32 %v963, %v796
    %v972 = vmul.f32 %v957, %v964
    %v973 = vadd.f32 %v971, %v972
    %v974 = vtanh.pop %v973
    %v975 = vmul.f32 %v970, %v974
    %s976 = smul.u32 3, 4
    %s977 = smul.addr %s976, 8
    %s978 = scalar_lea.vmem [#allocation4], %s977
    %v979 = vld [vmem:[%s978] sm:$0xff]
    %v980 = vld [vmem:[%s978 + $0x8] sm:$0xff]
    %v981 = vld [vmem:[%s978 + $0x10] sm:$0xff]
    %v982 = vld [vmem:[%s978 + $0x18] sm:$0xff]
    %983 = vmatprep.subr.mxu0 %v380
    %984 = vmatpush1.msra.mxu0 %v379
    %985 = vmatprep.subr.mxu0 %v384
    %986 = vmatpush1.msra.mxu0 %v383
    %987 = vmatprep.subr.mxu0 %v388
    %988 = vmatpush1.msra.mxu0 %v387
    %989 = vmatprep.subr.mxu0 %v392
    %990 = vmatpush1.msra.mxu0 %v391
    %991 = vmatprep.subr.mxu0 %v396
    %992 = vmatpush1.msra.mxu0 %v395
    %993 = vmatprep.subr.mxu0 %v400
    %994 = vmatpush1.msra.mxu0 %v399
    %995 = vmatprep.subr.mxu0 %v404
    %996 = vmatpush1.msra.mxu0 %v403
    %997 = vmatprep.subr.mxu0 %v408
    %998 = vmatpush1.msra.mxu0 %v407
    %999 = vmatprep.subr.mxu0 %v412
    %1000 = vmatpush1.msra.mxu0 %v411
    %1001 = vmatprep.subr.mxu0 %v416
    %1002 = vmatpush1.msra.mxu0 %v415
    %1003 = vmatprep.subr.mxu0 %v420
    %1004 = vmatpush1.msra.mxu0 %v419
    %1005 = vmatprep.subr.mxu0 %v424
    %1006 = vmatpush1.msra.mxu0 %v423
    %1007 = vmatprep.subr.mxu0 %v428
    %1008 = vmatpush1.msra.mxu0 %v427
    %1009 = vmatprep.subr.mxu0 %v432
    %1010 = vmatpush1.msra.mxu0 %v431
    %1011 = vmatprep.subr.mxu0 %v436
    %1012 = vmatpush1.msra.mxu0 %v435
    %1013 = vmatprep.subr.mxu0 %v440
    %1014 = vmatpush1.msra.mxu0 %v439
    %1015 = vmatprep.subr.mxu0 0.0
    %1016 = vmatpush1.msra.mxu0 0.0
    %1017 = vmatprep.subr.mxu0 0.0
    %1018 = vmatpush1.msra.mxu0 0.0
    %1019 = vmatprep.subr.mxu0 0.0
    %1020 = vmatpush1.msra.mxu0 0.0
    %1021 = vmatprep.subr.mxu0 0.0
    %1022 = vmatpush1.msra.mxu0 0.0
    %1023 = vmatprep.subr.mxu0 0.0
    %1024 = vmatpush1.msra.mxu0 0.0
    %1025 = vmatprep.subr.mxu0 0.0
    %1026 = vmatpush1.msra.mxu0 0.0
    %1027 = vmatprep.subr.mxu0 0.0
    %1028 = vmatpush1.msra.mxu0 0.0
    %1029 = vmatprep.subr.mxu0 0.0
    %1030 = vmatpush1.msra.mxu0 0.0
    %1031 = vmatprep.subr.mxu0 0.0
    %1032 = vmatpush1.msra.mxu0 0.0
    %1033 = vmatprep.subr.mxu0 0.0
    %1034 = vmatpush1.msra.mxu0 0.0
    %1035 = vmatprep.subr.mxu0 0.0
    %1036 = vmatpush1.msra.mxu0 0.0
    %1037 = vmatprep.subr.mxu0 0.0
    %1038 = vmatpush1.msra.mxu0 0.0
    %1039 = vmatprep.subr.mxu0 0.0
    %1040 = vmatpush1.msra.mxu0 0.0
    %1041 = vmatprep.subr.mxu0 0.0
    %1042 = vmatpush1.msra.mxu0 0.0
    %1043 = vmatprep.subr.mxu0 0.0
    %1044 = vmatpush1.msra.mxu0 0.0
    %1045 = vmatprep.subr.mxu0 0.0
    %1046 = vmatpush1.msra.mxu0 0.0
    %1047 = vmatprep.mubr.f32.mxu0 0.0
    %1048 = vmatmul.mubr.f32.gmra.mrb[0].mxu0 %v975
    %v1049 = vpop.f32.mrb[0].mxu0
    %v1050 = vadd.f32 0.0, %v1049
    %v1051 = vpop.f32.mrb[0].mxu0
    %v1052 = vadd.f32 0.0, %v1051
    %1053 = vdwg.mxu0
    %1054 = vmatprep.subr.mxu0 %v382
    %1055 = vmatpush1.msra.mxu0 %v381
    %1056 = vmatprep.subr.mxu0 %v386
    %1057 = vmatpush1.msra.mxu0 %v385
    %1058 = vmatprep.subr.mxu0 %v390
    %1059 = vmatpush1.msra.mxu0 %v389
    %1060 = vmatprep.subr.mxu0 %v394
    %1061 = vmatpush1.msra.mxu0 %v393
    %1062 = vmatprep.subr.mxu0 %v398
    %1063 = vmatpush1.msra.mxu0 %v397
    %1064 = vmatprep.subr.mxu0 %v402
    %1065 = vmatpush1.msra.mxu0 %v401
    %1066 = vmatprep.subr.mxu0 %v406
    %1067 = vmatpush1.msra.mxu0 %v405
    %1068 = vmatprep.subr.mxu0 %v410
    %1069 = vmatpush1.msra.mxu0 %v409
    %1070 = vmatprep.subr.mxu0 %v414
    %1071 = vmatpush1.msra.mxu0 %v413
    %1072 = vmatprep.subr.mxu0 %v418
    %1073 = vmatpush1.msra.mxu0 %v417
    %1074 = vmatprep.subr.mxu0 %v422
    %1075 = vmatpush1.msra.mxu0 %v421
    %1076 = vmatprep.subr.mxu0 %v426
    %1077 = vmatpush1.msra.mxu0 %v425
    %1078 = vmatprep.subr.mxu0 %v430
    %1079 = vmatpush1.msra.mxu0 %v429
    %1080 = vmatprep.subr.mxu0 %v434
    %1081 = vmatpush1.msra.mxu0 %v433
    %1082 = vmatprep.subr.mxu0 %v438
    %1083 = vmatpush1.msra.mxu0 %v437
    %1084 = vmatprep.subr.mxu0 %v442
    %1085 = vmatpush1.msra.mxu0 %v441
    %1086 = vmatprep.subr.mxu0 0.0
    %1087 = vmatpush1.msra.mxu0 0.0
    %1088 = vmatprep.subr.mxu0 0.0
    %1089 = vmatpush1.msra.mxu0 0.0
    %1090 = vmatprep.subr.mxu0 0.0
    %1091 = vmatpush1.msra.mxu0 0.0
    %1092 = vmatprep.subr.mxu0 0.0
    %1093 = vmatpush1.msra.mxu0 0.0
    %1094 = vmatprep.subr.mxu0 0.0
    %1095 = vmatpush1.msra.mxu0 0.0
    %1096 = vmatprep.subr.mxu0 0.0
    %1097 = vmatpush1.msra.mxu0 0.0
    %1098 = vmatprep.subr.mxu0 0.0
    %1099 = vmatpush1.msra.mxu0 0.0
    %1100 = vmatprep.subr.mxu0 0.0
    %1101 = vmatpush1.msra.mxu0 0.0
    %1102 = vmatprep.subr.mxu0 0.0
    %1103 = vmatpush1.msra.mxu0 0.0
    %1104 = vmatprep.subr.mxu0 0.0
    %1105 = vmatpush1.msra.mxu0 0.0
    %1106 = vmatprep.subr.mxu0 0.0
    %1107 = vmatpush1.msra.mxu0 0.0
    %1108 = vmatprep.subr.mxu0 0.0
    %1109 = vmatpush1.msra.mxu0 0.0
    %1110 = vmatprep.subr.mxu0 0.0
    %1111 = vmatpush1.msra.mxu0 0.0
    %1112 = vmatprep.subr.mxu0 0.0
    %1113 = vmatpush1.msra.mxu0 0.0
    %1114 = vmatprep.subr.mxu0 0.0
    %1115 = vmatpush1.msra.mxu0 0.0
    %1116 = vmatprep.subr.mxu0 0.0
    %1117 = vmatpush1.msra.mxu0 0.0
    %1118 = vmatprep.mubr.f32.mxu0 0.0
    %1119 = vmatmul.mubr.f32.gmra.mrb[0].mxu0 %v975
    %v1120 = vpop.f32.mrb[0].mxu0
    %v1121 = vadd.f32 0.0, %v1120
    %v1122 = vpop.f32.mrb[0].mxu0
    %v1123 = vadd.f32 0.0, %v1122
    %1124 = vdwg.mxu0
    %v1125 = vadd.f32 %v979, %v1050
    %v1126 = vadd.f32 %v980, %v1052
    %v1127 = vadd.f32 %v981, %v1121
    %v1128 = vadd.f32 %v982, %v1123
    %v1129 = vxor.u32 %v1125, 2147483648
    %v1130 = vmul.f32 %v1129, 1.442695
    %v1131 = vpow.pop %v1130
    %v1132 = vadd.f32 %v1131, 1.0
    %v1133 = vrcp.pop %v1132
    %v1134 = vmul.f32 1.0, %v1133
    %v1135 = vxor.u32 %v1126, 2147483648
    %v1136 = vmul.f32 %v1135, 1.442695
    %v1137 = vpow.pop %v1136
    %v1138 = vadd.f32 %v1137, 1.0
    %v1139 = vrcp.pop %v1138
    %v1140 = vmul.f32 1.0, %v1139
    %v1141 = vtanh.pop %v1127
    %v1142 = vxor.u32 %v1128, 2147483648
    %v1143 = vmul.f32 %v1142, 1.442695
    %v1144 = vpow.pop %v1143
    %v1145 = vadd.f32 %v1144, 1.0
    %v1146 = vrcp.pop %v1145
    %v1147 = vmul.f32 1.0, %v1146
    %v1148 = vmul.f32 %v1140, %v973
    %v1149 = vmul.f32 %v1134, %v1141
    %v1150 = vadd.f32 %v1148, %v1149
    %v1151 = vtanh.pop %v1150
    %v1152 = vmul.f32 %v1147, %v1151
    %s1153 = smul.u32 4, 4
    %s1154 = smul.addr %s1153, 8
    %s1155 = scalar_lea.vmem [#allocation4], %s1154
    %v1156 = vld [vmem:[%s1155] sm:$0xff]
    %v1157 = vld [vmem:[%s1155 + $0x8] sm:$0xff]
    %v1158 = vld [vmem:[%s1155 + $0x10] sm:$0xff]
    %v1159 = vld [vmem:[%s1155 + $0x18] sm:$0xff]
    %1160 = vmatprep.subr.mxu0 %v380
    %1161 = vmatpush1.msra.mxu0 %v379
    %1162 = vmatprep.subr.mxu0 %v384
    %1163 = vmatpush1.msra.mxu0 %v383
    %1164 = vmatprep.subr.mxu0 %v388
    %1165 = vmatpush1.msra.mxu0 %v387
    %1166 = vmatprep.subr.mxu0 %v392
    %1167 = vmatpush1.msra.mxu0 %v391
    %1168 = vmatprep.subr.mxu0 %v396
    %1169 = vmatpush1.msra.mxu0 %v395
    %1170 = vmatprep.subr.mxu0 %v400
    %1171 = vmatpush1.msra.mxu0 %v399
    %1172 = vmatprep.subr.mxu0 %v404
    %1173 = vmatpush1.msra.mxu0 %v403
    %1174 = vmatprep.subr.mxu0 %v408
    %1175 = vmatpush1.msra.mxu0 %v407
    %1176 = vmatprep.subr.mxu0 %v412
    %1177 = vmatpush1.msra.mxu0 %v411
    %1178 = vmatprep.subr.mxu0 %v416
    %1179 = vmatpush1.msra.mxu0 %v415
    %1180 = vmatprep.subr.mxu0 %v420
    %1181 = vmatpush1.msra.mxu0 %v419
    %1182 = vmatprep.subr.mxu0 %v424
    %1183 = vmatpush1.msra.mxu0 %v423
    %1184 = vmatprep.subr.mxu0 %v428
    %1185 = vmatpush1.msra.mxu0 %v427
    %1186 = vmatprep.subr.mxu0 %v432
    %1187 = vmatpush1.msra.mxu0 %v431
    %1188 = vmatprep.subr.mxu0 %v436
    %1189 = vmatpush1.msra.mxu0 %v435
    %1190 = vmatprep.subr.mxu0 %v440
    %1191 = vmatpush1.msra.mxu0 %v439
    %1192 = vmatprep.subr.mxu0 0.0
    %1193 = vmatpush1.msra.mxu0 0.0
    %1194 = vmatprep.subr.mxu0 0.0
    %1195 = vmatpush1.msra.mxu0 0.0
    %1196 = vmatprep.subr.mxu0 0.0
    %1197 = vmatpush1.msra.mxu0 0.0
    %1198 = vmatprep.subr.mxu0 0.0
    %1199 = vmatpush1.msra.mxu0 0.0
    %1200 = vmatprep.subr.mxu0 0.0
    %1201 = vmatpush1.msra.mxu0 0.0
    %1202 = vmatprep.subr.mxu0 0.0
    %1203 = vmatpush1.msra.mxu0 0.0
    %1204 = vmatprep.subr.mxu0 0.0
    %1205 = vmatpush1.msra.mxu0 0.0
    %1206 = vmatprep.subr.mxu0 0.0
    %1207 = vmatpush1.msra.mxu0 0.0
    %1208 = vmatprep.subr.mxu0 0.0
    %1209 = vmatpush1.msra.mxu0 0.0
    %1210 = vmatprep.subr.mxu0 0.0
    %1211 = vmatpush1.msra.mxu0 0.0
    %1212 = vmatprep.subr.mxu0 0.0
    %1213 = vmatpush1.msra.mxu0 0.0
    %1214 = vmatprep.subr.mxu0 0.0
    %1215 = vmatpush1.msra.mxu0 0.0
    %1216 = vmatprep.subr.mxu0 0.0
    %1217 = vmatpush1.msra.mxu0 0.0
    %1218 = vmatprep.subr.mxu0 0.0
    %1219 = vmatpush1.msra.mxu0 0.0
    %1220 = vmatprep.subr.mxu0 0.0
    %1221 = vmatpush1.msra.mxu0 0.0
    %1222 = vmatprep.subr.mxu0 0.0
    %1223 = vmatpush1.msra.mxu0 0.0
    %1224 = vmatprep.mubr.f32.mxu0 0.0
    %1225 = vmatmul.mubr.f32.gmra.mrb[0].mxu0 %v1152
    %v1226 = vpop.f32.mrb[0].mxu0
    %v1227 = vadd.f32 0.0, %v1226
    %v1228 = vpop.f32.mrb[0].mxu0
    %v1229 = vadd.f32 0.0, %v1228
    %1230 = vdwg.mxu0
    %1231 = vmatprep.subr.mxu0 %v382
    %1232 = vmatpush1.msra.mxu0 %v381
    %1233 = vmatprep.subr.mxu0 %v386
    %1234 = vmatpush1.msra.mxu0 %v385
    %1235 = vmatprep.subr.mxu0 %v390
    %1236 = vmatpush1.msra.mxu0 %v389
    %1237 = vmatprep.subr.mxu0 %v394
    %1238 = vmatpush1.msra.mxu0 %v393
    %1239 = vmatprep.subr.mxu0 %v398
    %1240 = vmatpush1.msra.mxu0 %v397
    %1241 = vmatprep.subr.mxu0 %v402
    %1242 = vmatpush1.msra.mxu0 %v401
    %1243 = vmatprep.subr.mxu0 %v406
    %1244 = vmatpush1.msra.mxu0 %v405
    %1245 = vmatprep.subr.mxu0 %v410
    %1246 = vmatpush1.msra.mxu0 %v409
    %1247 = vmatprep.subr.mxu0 %v414
    %1248 = vmatpush1.msra.mxu0 %v413
    %1249 = vmatprep.subr.mxu0 %v418
    %1250 = vmatpush1.msra.mxu0 %v417
    %1251 = vmatprep.subr.mxu0 %v422
    %1252 = vmatpush1.msra.mxu0 %v421
    %1253 = vmatprep.subr.mxu0 %v426
    %1254 = vmatpush1.msra.mxu0 %v425
    %1255 = vmatprep.subr.mxu0 %v430
    %1256 = vmatpush1.msra.mxu0 %v429
    %1257 = vmatprep.subr.mxu0 %v434
    %1258 = vmatpush1.msra.mxu0 %v433
    %1259 = vmatprep.subr.mxu0 %v438
    %1260 = vmatpush1.msra.mxu0 %v437
    %1261 = vmatprep.subr.mxu0 %v442
    %1262 = vmatpush1.msra.mxu0 %v441
    %1263 = vmatprep.subr.mxu0 0.0
    %1264 = vmatpush1.msra.mxu0 0.0
    %1265 = vmatprep.subr.mxu0 0.0
    %1266 = vmatpush1.msra.mxu0 0.0
    %1267 = vmatprep.subr.mxu0 0.0
    %1268 = vmatpush1.msra.mxu0 0.0
    %1269 = vmatprep.subr.mxu0 0.0
    %1270 = vmatpush1.msra.mxu0 0.0
    %1271 = vmatprep.subr.mxu0 0.0
    %1272 = vmatpush1.msra.mxu0 0.0
    %1273 = vmatprep.subr.mxu0 0.0
    %1274 = vmatpush1.msra.mxu0 0.0
    %1275 = vmatprep.subr.mxu0 0.0
    %1276 = vmatpush1.msra.mxu0 0.0
    %1277 = vmatprep.subr.mxu0 0.0
    %1278 = vmatpush1.msra.mxu0 0.0
    %1279 = vmatprep.subr.mxu0 0.0
    %1280 = vmatpush1.msra.mxu0 0.0
    %1281 = vmatprep.subr.mxu0 0.0
    %1282 = vmatpush1.msra.mxu0 0.0
    %1283 = vmatprep.subr.mxu0 0.0
    %1284 = vmatpush1.msra.mxu0 0.0
    %1285 = vmatprep.subr.mxu0 0.0
    %1286 = vmatpush1.msra.mxu0 0.0
    %1287 = vmatprep.subr.mxu0 0.0
    %1288 = vmatpush1.msra.mxu0 0.0
    %1289 = vmatprep.subr.mxu0 0.0
    %1290 = vmatpush1.msra.mxu0 0.0
    %1291 = vmatprep.subr.mxu0 0.0
    %1292 = vmatpush1.msra.mxu0 0.0
    %1293 = vmatprep.subr.mxu0 0.0
    %1294 = vmatpush1.msra.mxu0 0.0
    %1295 = vmatprep.mubr.f32.mxu0 0.0
    %1296 = vmatmul.mubr.f32.gmra.mrb[0].mxu0 %v1152
    %v1297 = vpop.f32.mrb[0].mxu0
    %v1298 = vadd.f32 0.0, %v1297
    %v1299 = vpop.f32.mrb[0].mxu0
    %v1300 = vadd.f32 0.0, %v1299
    %1301 = vdwg.mxu0
    %v1302 = vadd.f32 %v1156, %v1227
    %v1303 = vadd.f32 %v1157, %v1229
    %v1304 = vadd.f32 %v1158, %v1298
    %v1305 = vadd.f32 %v1159, %v1300
    %v1306 = vxor.u32 %v1302, 2147483648
    %v1307 = vmul.f32 %v1306, 1.442695
    %v1308 = vpow.pop %v1307
    %v1309 = vadd.f32 %v1308, 1.0
    %v1310 = vrcp.pop %v1309
    %v1311 = vmul.f32 1.0, %v1310
    %v1312 = vxor.u32 %v1303, 2147483648
    %v1313 = vmul.f32 %v1312, 1.442695
    %v1314 = vpow.pop %v1313
    %v1315 = vadd.f32 %v1314, 1.0
    %v1316 = vrcp.pop %v1315
    %v1317 = vmul.f32 1.0, %v1316
    %v1318 = vtanh.pop %v1304
    %v1319 = vxor.u32 %v1305, 2147483648
    %v1320 = vmul.f32 %v1319, 1.442695
    %v1321 = vpow.pop %v1320
    %v1322 = vadd.f32 %v1321, 1.0
    %v1323 = vrcp.pop %v1322
    %v1324 = vmul.f32 1.0, %v1323
    %v1325 = vmul.f32 %v1317, %v1150
    %v1326 = vmul.f32 %v1311, %v1318
    %v1327 = vadd.f32 %v1325, %v1326
    %v1328 = vtanh.pop %v1327
    %v1329 = vmul.f32 %v1324, %v1328
    %s1330 = smul.u32 5, 4
    %s1331 = smul.addr %s1330, 8
    %s1332 = scalar_lea.vmem [#allocation4], %s1331
    %v1333 = vld [vmem:[%s1332] sm:$0xff]
    %v1334 = vld [vmem:[%s1332 + $0x8] sm:$0xff]
    %v1335 = vld [vmem:[%s1332 + $0x10] sm:$0xff]
    %v1336 = vld [vmem:[%s1332 + $0x18] sm:$0xff]
    %1337 = vmatprep.subr.mxu0 %v380
    %1338 = vmatpush1.msra.mxu0 %v379
    %1339 = vmatprep.subr.mxu0 %v384
    %1340 = vmatpush1.msra.mxu0 %v383
    %1341 = vmatprep.subr.mxu0 %v388
    %1342 = vmatpush1.msra.mxu0 %v387
    %1343 = vmatprep.subr.mxu0 %v392
    %1344 = vmatpush1.msra.mxu0 %v391
    %1345 = vmatprep.subr.mxu0 %v396
    %1346 = vmatpush1.msra.mxu0 %v395
    %1347 = vmatprep.subr.mxu0 %v400
    %1348 = vmatpush1.msra.mxu0 %v399
    %1349 = vmatprep.subr.mxu0 %v404
    %1350 = vmatpush1.msra.mxu0 %v403
    %1351 = vmatprep.subr.mxu0 %v408
    %1352 = vmatpush1.msra.mxu0 %v407
    %1353 = vmatprep.subr.mxu0 %v412
    %1354 = vmatpush1.msra.mxu0 %v411
    %1355 = vmatprep.subr.mxu0 %v416
    %1356 = vmatpush1.msra.mxu0 %v415
    %1357 = vmatprep.subr.mxu0 %v420
    %1358 = vmatpush1.msra.mxu0 %v419
    %1359 = vmatprep.subr.mxu0 %v424
    %1360 = vmatpush1.msra.mxu0 %v423
    %1361 = vmatprep.subr.mxu0 %v428
    %1362 = vmatpush1.msra.mxu0 %v427
    %1363 = vmatprep.subr.mxu0 %v432
    %1364 = vmatpush1.msra.mxu0 %v431
    %1365 = vmatprep.subr.mxu0 %v436
    %1366 = vmatpush1.msra.mxu0 %v435
    %1367 = vmatprep.subr.mxu0 %v440
    %1368 = vmatpush1.msra.mxu0 %v439
    %1369 = vmatprep.subr.mxu0 0.0
    %1370 = vmatpush1.msra.mxu0 0.0
    %1371 = vmatprep.subr.mxu0 0.0
    %1372 = vmatpush1.msra.mxu0 0.0
    %1373 = vmatprep.subr.mxu0 0.0
    %1374 = vmatpush1.msra.mxu0 0.0
    %1375 = vmatprep.subr.mxu0 0.0
    %1376 = vmatpush1.msra.mxu0 0.0
    %1377 = vmatprep.subr.mxu0 0.0
    %1378 = vmatpush1.msra.mxu0 0.0
    %1379 = vmatprep.subr.mxu0 0.0
    %1380 = vmatpush1.msra.mxu0 0.0
    %1381 = vmatprep.subr.mxu0 0.0
    %1382 = vmatpush1.msra.mxu0 0.0
    %1383 = vmatprep.subr.mxu0 0.0
    %1384 = vmatpush1.msra.mxu0 0.0
    %1385 = vmatprep.subr.mxu0 0.0
    %1386 = vmatpush1.msra.mxu0 0.0
    %1387 = vmatprep.subr.mxu0 0.0
    %1388 = vmatpush1.msra.mxu0 0.0
    %1389 = vmatprep.subr.mxu0 0.0
    %1390 = vmatpush1.msra.mxu0 0.0
    %1391 = vmatprep.subr.mxu0 0.0
    %1392 = vmatpush1.msra.mxu0 0.0
    %1393 = vmatprep.subr.mxu0 0.0
    %1394 = vmatpush1.msra.mxu0 0.0
    %1395 = vmatprep.subr.mxu0 0.0
    %1396 = vmatpush1.msra.mxu0 0.0
    %1397 = vmatprep.subr.mxu0 0.0
    %1398 = vmatpush1.msra.mxu0 0.0
    %1399 = vmatprep.subr.mxu0 0.0
    %1400 = vmatpush1.msra.mxu0 0.0
    %1401 = vmatprep.mubr.f32.mxu0 0.0
    %1402 = vmatmul.mubr.f32.gmra.mrb[0].mxu0 %v1329
    %v1403 = vpop.f32.mrb[0].mxu0
    %v1404 = vadd.f32 0.0, %v1403
    %v1405 = vpop.f32.mrb[0].mxu0
    %v1406 = vadd.f32 0.0, %v1405
    %1407 = vdwg.mxu0
    %1408 = vmatprep.subr.mxu0 %v382
    %1409 = vmatpush1.msra.mxu0 %v381
    %1410 = vmatprep.subr.mxu0 %v386
    %1411 = vmatpush1.msra.mxu0 %v385
    %1412 = vmatprep.subr.mxu0 %v390
    %1413 = vmatpush1.msra.mxu0 %v389
    %1414 = vmatprep.subr.mxu0 %v394
    %1415 = vmatpush1.msra.mxu0 %v393
    %1416 = vmatprep.subr.mxu0 %v398
    %1417 = vmatpush1.msra.mxu0 %v397
    %1418 = vmatprep.subr.mxu0 %v402
    %1419 = vmatpush1.msra.mxu0 %v401
    %1420 = vmatprep.subr.mxu0 %v406
    %1421 = vmatpush1.msra.mxu0 %v405
    %1422 = vmatprep.subr.mxu0 %v410
    %1423 = vmatpush1.msra.mxu0 %v409
    %1424 = vmatprep.subr.mxu0 %v414
    %1425 = vmatpush1.msra.mxu0 %v413
    %1426 = vmatprep.subr.mxu0 %v418
    %1427 = vmatpush1.msra.mxu0 %v417
    %1428 = vmatprep.subr.mxu0 %v422
    %1429 = vmatpush1.msra.mxu0 %v421
    %1430 = vmatprep.subr.mxu0 %v426
    %1431 = vmatpush1.msra.mxu0 %v425
    %1432 = vmatprep.subr.mxu0 %v430
    %1433 = vmatpush1.msra.mxu0 %v429
    %1434 = vmatprep.subr.mxu0 %v434
    %1435 = vmatpush1.msra.mxu0 %v433
    %1436 = vmatprep.subr.mxu0 %v438
    %1437 = vmatpush1.msra.mxu0 %v437
    %1438 = vmatprep.subr.mxu0 %v442
    %1439 = vmatpush1.msra.mxu0 %v441
    %1440 = vmatprep.subr.mxu0 0.0
    %1441 = vmatpush1.msra.mxu0 0.0
    %1442 = vmatprep.subr.mxu0 0.0
    %1443 = vmatpush1.msra.mxu0 0.0
    %1444 = vmatprep.subr.mxu0 0.0
    %1445 = vmatpush1.msra.mxu0 0.0
    %1446 = vmatprep.subr.mxu0 0.0
    %1447 = vmatpush1.msra.mxu0 0.0
    %1448 = vmatprep.subr.mxu0 0.0
    %1449 = vmatpush1.msra.mxu0 0.0
    %1450 = vmatprep.subr.mxu0 0.0
    %1451 = vmatpush1.msra.mxu0 0.0
    %1452 = vmatprep.subr.mxu0 0.0
    %1453 = vmatpush1.msra.mxu0 0.0
    %1454 = vmatprep.subr.mxu0 0.0
    %1455 = vmatpush1.msra.mxu0 0.0
    %1456 = vmatprep.subr.mxu0 0.0
    %1457 = vmatpush1.msra.mxu0 0.0
    %1458 = vmatprep.subr.mxu0 0.0
    %1459 = vmatpush1.msra.mxu0 0.0
    %1460 = vmatprep.subr.mxu0 0.0
    %1461 = vmatpush1.msra.mxu0 0.0
    %1462 = vmatprep.subr.mxu0 0.0
    %1463 = vmatpush1.msra.mxu0 0.0
    %1464 = vmatprep.subr.mxu0 0.0
    %1465 = vmatpush1.msra.mxu0 0.0
    %1466 = vmatprep.subr.mxu0 0.0
    %1467 = vmatpush1.msra.mxu0 0.0
    %1468 = vmatprep.subr.mxu0 0.0
    %1469 = vmatpush1.msra.mxu0 0.0
    %1470 = vmatprep.subr.mxu0 0.0
    %1471 = vmatpush1.msra.mxu0 0.0
    %1472 = vmatprep.mubr.f32.mxu0 0.0
    %1473 = vmatmul.mubr.f32.gmra.mrb[0].mxu0 %v1329
    %v1474 = vpop.f32.mrb[0].mxu0
    %v1475 = vadd.f32 0.0, %v1474
    %v1476 = vpop.f32.mrb[0].mxu0
    %v1477 = vadd.f32 0.0, %v1476
    %1478 = vdwg.mxu0
    %v1479 = vadd.f32 %v1333, %v1404
    %v1480 = vadd.f32 %v1334, %v1406
    %v1481 = vadd.f32 %v1335, %v1475
    %v1482 = vadd.f32 %v1336, %v1477
    %v1483 = vxor.u32 %v1479, 2147483648
    %v1484 = vmul.f32 %v1483, 1.442695
    %v1485 = vpow.pop %v1484
    %v1486 = vadd.f32 %v1485, 1.0
    %v1487 = vrcp.pop %v1486
    %v1488 = vmul.f32 1.0, %v1487
    %v1489 = vxor.u32 %v1480, 2147483648
    %v1490 = vmul.f32 %v1489, 1.442695
    %v1491 = vpow.pop %v1490
    %v1492 = vadd.f32 %v1491, 1.0
    %v1493 = vrcp.pop %v1492
    %v1494 = vmul.f32 1.0, %v1493
    %v1495 = vtanh.pop %v1481
    %v1496 = vxor.u32 %v1482, 2147483648
    %v1497 = vmul.f32 %v1496, 1.442695
    %v1498 = vpow.pop %v1497
    %v1499 = vadd.f32 %v1498, 1.0
    %v1500 = vrcp.pop %v1499
    %v1501 = vmul.f32 1.0, %v1500
    %v1502 = vmul.f32 %v1494, %v1327
    %v1503 = vmul.f32 %v1488, %v1495
    %v1504 = vadd.f32 %v1502, %v1503
    %v1505 = vtanh.pop %v1504
    %v1506 = vmul.f32 %v1501, %v1505
    %s1507 = smul.u32 6, 4
    %s1508 = smul.addr %s1507, 8
    %s1509 = scalar_lea.vmem [#allocation4], %s1508
    %v1510 = vld [vmem:[%s1509] sm:$0xff]
    %v1511 = vld [vmem:[%s1509 + $0x8] sm:$0xff]
    %v1512 = vld [vmem:[%s1509 + $0x10] sm:$0xff]
    %v1513 = vld [vmem:[%s1509 + $0x18] sm:$0xff]
    %1514 = vmatprep.subr.mxu0 %v380
    %1515 = vmatpush1.msra.mxu0 %v379
    %1516 = vmatprep.subr.mxu0 %v384
    %1517 = vmatpush1.msra.mxu0 %v383
    %1518 = vmatprep.subr.mxu0 %v388
    %1519 = vmatpush1.msra.mxu0 %v387
    %1520 = vmatprep.subr.mxu0 %v392
    %1521 = vmatpush1.msra.mxu0 %v391
    %1522 = vmatprep.subr.mxu0 %v396
    %1523 = vmatpush1.msra.mxu0 %v395
    %1524 = vmatprep.subr.mxu0 %v400
    %1525 = vmatpush1.msra.mxu0 %v399
    %1526 = vmatprep.subr.mxu0 %v404
    %1527 = vmatpush1.msra.mxu0 %v403
    %1528 = vmatprep.subr.mxu0 %v408
    %1529 = vmatpush1.msra.mxu0 %v407
    %1530 = vmatprep.subr.mxu0 %v412
    %1531 = vmatpush1.msra.mxu0 %v411
    %1532 = vmatprep.subr.mxu0 %v416
    %1533 = vmatpush1.msra.mxu0 %v415
    %1534 = vmatprep.subr.mxu0 %v420
    %1535 = vmatpush1.msra.mxu0 %v419
    %1536 = vmatprep.subr.mxu0 %v424
    %1537 = vmatpush1.msra.mxu0 %v423
    %1538 = vmatprep.subr.mxu0 %v428
    %1539 = vmatpush1.msra.mxu0 %v427
    %1540 = vmatprep.subr.mxu0 %v432
    %1541 = vmatpush1.msra.mxu0 %v431
    %1542 = vmatprep.subr.mxu0 %v436
    %1543 = vmatpush1.msra.mxu0 %v435
    %1544 = vmatprep.subr.mxu0 %v440
    %1545 = vmatpush1.msra.mxu0 %v439
    %1546 = vmatprep.subr.mxu0 0.0
    %1547 = vmatpush1.msra.mxu0 0.0
    %1548 = vmatprep.subr.mxu0 0.0
    %1549 = vmatpush1.msra.mxu0 0.0
    %1550 = vmatprep.subr.mxu0 0.0
    %1551 = vmatpush1.msra.mxu0 0.0
    %1552 = vmatprep.subr.mxu0 0.0
    %1553 = vmatpush1.msra.mxu0 0.0
    %1554 = vmatprep.subr.mxu0 0.0
    %1555 = vmatpush1.msra.mxu0 0.0
    %1556 = vmatprep.subr.mxu0 0.0
    %1557 = vmatpush1.msra.mxu0 0.0
    %1558 = vmatprep.subr.mxu0 0.0
    %1559 = vmatpush1.msra.mxu0 0.0
    %1560 = vmatprep.subr.mxu0 0.0
    %1561 = vmatpush1.msra.mxu0 0.0
    %1562 = vmatprep.subr.mxu0 0.0
    %1563 = vmatpush1.msra.mxu0 0.0
    %1564 = vmatprep.subr.mxu0 0.0
    %1565 = vmatpush1.msra.mxu0 0.0
    %1566 = vmatprep.subr.mxu0 0.0
    %1567 = vmatpush1.msra.mxu0 0.0
    %1568 = vmatprep.subr.mxu0 0.0
    %1569 = vmatpush1.msra.mxu0 0.0
    %1570 = vmatprep.subr.mxu0 0.0
    %1571 = vmatpush1.msra.mxu0 0.0
    %1572 = vmatprep.subr.mxu0 0.0
    %1573 = vmatpush1.msra.mxu0 0.0
    %1574 = vmatprep.subr.mxu0 0.0
    %1575 = vmatpush1.msra.mxu0 0.0
    %1576 = vmatprep.subr.mxu0 0.0
    %1577 = vmatpush1.msra.mxu0 0.0
    %1578 = vmatprep.mubr.f32.mxu0 0.0
    %1579 = vmatmul.mubr.f32.gmra.mrb[0].mxu0 %v1506
    %v1580 = vpop.f32.mrb[0].mxu0
    %v1581 = vadd.f32 0.0, %v1580
    %v1582 = vpop.f32.mrb[0].mxu0
    %v1583 = vadd.f32 0.0, %v1582
    %1584 = vdwg.mxu0
    %1585 = vmatprep.subr.mxu0 %v382
    %1586 = vmatpush1.msra.mxu0 %v381
    %1587 = vmatprep.subr.mxu0 %v386
    %1588 = vmatpush1.msra.mxu0 %v385
    %1589 = vmatprep.subr.mxu0 %v390
    %1590 = vmatpush1.msra.mxu0 %v389
    %1591 = vmatprep.subr.mxu0 %v394
    %1592 = vmatpush1.msra.mxu0 %v393
    %1593 = vmatprep.subr.mxu0 %v398
    %1594 = vmatpush1.msra.mxu0 %v397
    %1595 = vmatprep.subr.mxu0 %v402
    %1596 = vmatpush1.msra.mxu0 %v401
    %1597 = vmatprep.subr.mxu0 %v406
    %1598 = vmatpush1.msra.mxu0 %v405
    %1599 = vmatprep.subr.mxu0 %v410
    %1600 = vmatpush1.msra.mxu0 %v409
    %1601 = vmatprep.subr.mxu0 %v414
    %1602 = vmatpush1.msra.mxu0 %v413
    %1603 = vmatprep.subr.mxu0 %v418
    %1604 = vmatpush1.msra.mxu0 %v417
    %1605 = vmatprep.subr.mxu0 %v422
    %1606 = vmatpush1.msra.mxu0 %v421
    %1607 = vmatprep.subr.mxu0 %v426
    %1608 = vmatpush1.msra.mxu0 %v425
    %1609 = vmatprep.subr.mxu0 %v430
    %1610 = vmatpush1.msra.mxu0 %v429
    %1611 = vmatprep.subr.mxu0 %v434
    %1612 = vmatpush1.msra.mxu0 %v433
    %1613 = vmatprep.subr.mxu0 %v438
    %1614 = vmatpush1.msra.mxu0 %v437
    %1615 = vmatprep.subr.mxu0 %v442
    %1616 = vmatpush1.msra.mxu0 %v441
    %1617 = vmatprep.subr.mxu0 0.0
    %1618 = vmatpush1.msra.mxu0 0.0
    %1619 = vmatprep.subr.mxu0 0.0
    %1620 = vmatpush1.msra.mxu0 0.0
    %1621 = vmatprep.subr.mxu0 0.0
    %1622 = vmatpush1.msra.mxu0 0.0
    %1623 = vmatprep.subr.mxu0 0.0
    %1624 = vmatpush1.msra.mxu0 0.0
    %1625 = vmatprep.subr.mxu0 0.0
    %1626 = vmatpush1.msra.mxu0 0.0
    %1627 = vmatprep.subr.mxu0 0.0
    %1628 = vmatpush1.msra.mxu0 0.0
    %1629 = vmatprep.subr.mxu0 0.0
    %1630 = vmatpush1.msra.mxu0 0.0
    %1631 = vmatprep.subr.mxu0 0.0
    %1632 = vmatpush1.msra.mxu0 0.0
    %1633 = vmatprep.subr.mxu0 0.0
    %1634 = vmatpush1.msra.mxu0 0.0
    %1635 = vmatprep.subr.mxu0 0.0
    %1636 = vmatpush1.msra.mxu0 0.0
    %1637 = vmatprep.subr.mxu0 0.0
    %1638 = vmatpush1.msra.mxu0 0.0
    %1639 = vmatprep.subr.mxu0 0.0
    %1640 = vmatpush1.msra.mxu0 0.0
    %1641 = vmatprep.subr.mxu0 0.0
    %1642 = vmatpush1.msra.mxu0 0.0
    %1643 = vmatprep.subr.mxu0 0.0
    %1644 = vmatpush1.msra.mxu0 0.0
    %1645 = vmatprep.subr.mxu0 0.0
    %1646 = vmatpush1.msra.mxu0 0.0
    %1647 = vmatprep.subr.mxu0 0.0
    %1648 = vmatpush1.msra.mxu0 0.0
    %1649 = vmatprep.mubr.f32.mxu0 0.0
    %1650 = vmatmul.mubr.f32.gmra.mrb[0].mxu0 %v1506
    %v1651 = vpop.f32.mrb[0].mxu0
    %v1652 = vadd.f32 0.0, %v1651
    %v1653 = vpop.f32.mrb[0].mxu0
    %v1654 = vadd.f32 0.0, %v1653
    %1655 = vdwg.mxu0
    %v1656 = vadd.f32 %v1510, %v1581
    %v1657 = vadd.f32 %v1511, %v1583
    %v1658 = vadd.f32 %v1512, %v1652
    %v1659 = vadd.f32 %v1513, %v1654
    %v1660 = vxor.u32 %v1656, 2147483648
    %v1661 = vmul.f32 %v1660, 1.442695
    %v1662 = vpow.pop %v1661
    %v1663 = vadd.f32 %v1662, 1.0
    %v1664 = vrcp.pop %v1663
    %v1665 = vmul.f32 1.0, %v1664
    %v1666 = vxor.u32 %v1657, 2147483648
    %v1667 = vmul.f32 %v1666, 1.442695
    %v1668 = vpow.pop %v1667
    %v1669 = vadd.f32 %v1668, 1.0
    %v1670 = vrcp.pop %v1669
    %v1671 = vmul.f32 1.0, %v1670
    %v1672 = vtanh.pop %v1658
    %v1673 = vxor.u32 %v1659, 2147483648
    %v1674 = vmul.f32 %v1673, 1.442695
    %v1675 = vpow.pop %v1674
    %v1676 = vadd.f32 %v1675, 1.0
    %v1677 = vrcp.pop %v1676
    %v1678 = vmul.f32 1.0, %v1677
    %v1679 = vmul.f32 %v1671, %v1504
    %v1680 = vmul.f32 %v1665, %v1672
    %v1681 = vadd.f32 %v1679, %v1680
    %v1682 = vtanh.pop %v1681
    %v1683 = vmul.f32 %v1678, %v1682
    %s1684 = smul.u32 7, 4
    %s1685 = smul.addr %s1684, 8
    %s1686 = scalar_lea.vmem [#allocation4], %s1685
    %v1687 = vld [vmem:[%s1686] sm:$0xff]
    %v1688 = vld [vmem:[%s1686 + $0x8] sm:$0xff]
    %v1689 = vld [vmem:[%s1686 + $0x10] sm:$0xff]
    %v1690 = vld [vmem:[%s1686 + $0x18] sm:$0xff]
    %1691 = vmatprep.subr.mxu0 %v380
    %1692 = vmatpush1.msra.mxu0 %v379
    %1693 = vmatprep.subr.mxu0 %v384
    %1694 = vmatpush1.msra.mxu0 %v383
    %1695 = vmatprep.subr.mxu0 %v388
    %1696 = vmatpush1.msra.mxu0 %v387
    %1697 = vmatprep.subr.mxu0 %v392
    %1698 = vmatpush1.msra.mxu0 %v391
    %1699 = vmatprep.subr.mxu0 %v396
    %1700 = vmatpush1.msra.mxu0 %v395
    %1701 = vmatprep.subr.mxu0 %v400
    %1702 = vmatpush1.msra.mxu0 %v399
    %1703 = vmatprep.subr.mxu0 %v404
    %1704 = vmatpush1.msra.mxu0 %v403
    %1705 = vmatprep.subr.mxu0 %v408
    %1706 = vmatpush1.msra.mxu0 %v407
    %1707 = vmatprep.subr.mxu0 %v412
    %1708 = vmatpush1.msra.mxu0 %v411
    %1709 = vmatprep.subr.mxu0 %v416
    %1710 = vmatpush1.msra.mxu0 %v415
    %1711 = vmatprep.subr.mxu0 %v420
    %1712 = vmatpush1.msra.mxu0 %v419
    %1713 = vmatprep.subr.mxu0 %v424
    %1714 = vmatpush1.msra.mxu0 %v423
    %1715 = vmatprep.subr.mxu0 %v428
    %1716 = vmatpush1.msra.mxu0 %v427
    %1717 = vmatprep.subr.mxu0 %v432
    %1718 = vmatpush1.msra.mxu0 %v431
    %1719 = vmatprep.subr.mxu0 %v436
    %1720 = vmatpush1.msra.mxu0 %v435
    %1721 = vmatprep.subr.mxu0 %v440
    %1722 = vmatpush1.msra.mxu0 %v439
    %1723 = vmatprep.subr.mxu0 0.0
    %1724 = vmatpush1.msra.mxu0 0.0
    %1725 = vmatprep.subr.mxu0 0.0
    %1726 = vmatpush1.msra.mxu0 0.0
    %1727 = vmatprep.subr.mxu0 0.0
    %1728 = vmatpush1.msra.mxu0 0.0
    %1729 = vmatprep.subr.mxu0 0.0
    %1730 = vmatpush1.msra.mxu0 0.0
    %1731 = vmatprep.subr.mxu0 0.0
    %1732 = vmatpush1.msra.mxu0 0.0
    %1733 = vmatprep.subr.mxu0 0.0
    %1734 = vmatpush1.msra.mxu0 0.0
    %1735 = vmatprep.subr.mxu0 0.0
    %1736 = vmatpush1.msra.mxu0 0.0
    %1737 = vmatprep.subr.mxu0 0.0
    %1738 = vmatpush1.msra.mxu0 0.0
    %1739 = vmatprep.subr.mxu0 0.0
    %1740 = vmatpush1.msra.mxu0 0.0
    %1741 = vmatprep.subr.mxu0 0.0
    %1742 = vmatpush1.msra.mxu0 0.0
    %1743 = vmatprep.subr.mxu0 0.0
    %1744 = vmatpush1.msra.mxu0 0.0
    %1745 = vmatprep.subr.mxu0 0.0
    %1746 = vmatpush1.msra.mxu0 0.0
    %1747 = vmatprep.subr.mxu0 0.0
    %1748 = vmatpush1.msra.mxu0 0.0
    %1749 = vmatprep.subr.mxu0 0.0
    %1750 = vmatpush1.msra.mxu0 0.0
    %1751 = vmatprep.subr.mxu0 0.0
    %1752 = vmatpush1.msra.mxu0 0.0
    %1753 = vmatprep.subr.mxu0 0.0
    %1754 = vmatpush1.msra.mxu0 0.0
    %1755 = vmatprep.mubr.f32.mxu0 0.0
    %1756 = vmatmul.mubr.f32.gmra.mrb[0].mxu0 %v1683
    %v1757 = vpop.f32.mrb[0].mxu0
    %v1758 = vadd.f32 0.0, %v1757
    %v1759 = vpop.f32.mrb[0].mxu0
    %v1760 = vadd.f32 0.0, %v1759
    %1761 = vdwg.mxu0
    %1762 = vmatprep.subr.mxu0 %v382
    %1763 = vmatpush1.msra.mxu0 %v381
    %1764 = vmatprep.subr.mxu0 %v386
    %1765 = vmatpush1.msra.mxu0 %v385
    %1766 = vmatprep.subr.mxu0 %v390
    %1767 = vmatpush1.msra.mxu0 %v389
    %1768 = vmatprep.subr.mxu0 %v394
    %1769 = vmatpush1.msra.mxu0 %v393
    %1770 = vmatprep.subr.mxu0 %v398
    %1771 = vmatpush1.msra.mxu0 %v397
    %1772 = vmatprep.subr.mxu0 %v402
    %1773 = vmatpush1.msra.mxu0 %v401
    %1774 = vmatprep.subr.mxu0 %v406
    %1775 = vmatpush1.msra.mxu0 %v405
    %1776 = vmatprep.subr.mxu0 %v410
    %1777 = vmatpush1.msra.mxu0 %v409
    %1778 = vmatprep.subr.mxu0 %v414
    %1779 = vmatpush1.msra.mxu0 %v413
    %1780 = vmatprep.subr.mxu0 %v418
    %1781 = vmatpush1.msra.mxu0 %v417
    %1782 = vmatprep.subr.mxu0 %v422
    %1783 = vmatpush1.msra.mxu0 %v421
    %1784 = vmatprep.subr.mxu0 %v426
    %1785 = vmatpush1.msra.mxu0 %v425
    %1786 = vmatprep.subr.mxu0 %v430
    %1787 = vmatpush1.msra.mxu0 %v429
    %1788 = vmatprep.subr.mxu0 %v434
    %1789 = vmatpush1.msra.mxu0 %v433
    %1790 = vmatprep.subr.mxu0 %v438
    %1791 = vmatpush1.msra.mxu0 %v437
    %1792 = vmatprep.subr.mxu0 %v442
    %1793 = vmatpush1.msra.mxu0 %v441
    %1794 = vmatprep.subr.mxu0 0.0
    %1795 = vmatpush1.msra.mxu0 0.0
    %1796 = vmatprep.subr.mxu0 0.0
    %1797 = vmatpush1.msra.mxu0 0.0
    %1798 = vmatprep.subr.mxu0 0.0
    %1799 = vmatpush1.msra.mxu0 0.0
    %1800 = vmatprep.subr.mxu0 0.0
    %1801 = vmatpush1.msra.mxu0 0.0
    %1802 = vmatprep.subr.mxu0 0.0
    %1803 = vmatpush1.msra.mxu0 0.0
    %1804 = vmatprep.subr.mxu0 0.0
    %1805 = vmatpush1.msra.mxu0 0.0
    %1806 = vmatprep.subr.mxu0 0.0
    %1807 = vmatpush1.msra.mxu0 0.0
    %1808 = vmatprep.subr.mxu0 0.0
    %1809 = vmatpush1.msra.mxu0 0.0
    %1810 = vmatprep.subr.mxu0 0.0
    %1811 = vmatpush1.msra.mxu0 0.0
    %1812 = vmatprep.subr.mxu0 0.0
    %1813 = vmatpush1.msra.mxu0 0.0
    %1814 = vmatprep.subr.mxu0 0.0
    %1815 = vmatpush1.msra.mxu0 0.0
    %1816 = vmatprep.subr.mxu0 0.0
    %1817 = vmatpush1.msra.mxu0 0.0
    %1818 = vmatprep.subr.mxu0 0.0
    %1819 = vmatpush1.msra.mxu0 0.0
    %1820 = vmatprep.subr.mxu0 0.0
    %1821 = vmatpush1.msra.mxu0 0.0
    %1822 = vmatprep.subr.mxu0 0.0
    %1823 = vmatpush1.msra.mxu0 0.0
    %1824 = vmatprep.subr.mxu0 0.0
    %1825 = vmatpush1.msra.mxu0 0.0
    %1826 = vmatprep.mubr.f32.mxu0 0.0
    %1827 = vmatmul.mubr.f32.gmra.mrb[0].mxu0 %v1683
    %v1828 = vpop.f32.mrb[0].mxu0
    %v1829 = vadd.f32 0.0, %v1828
    %v1830 = vpop.f32.mrb[0].mxu0
    %v1831 = vadd.f32 0.0, %v1830
    %1832 = vdwg.mxu0
    %v1833 = vadd.f32 %v1687, %v1758
    %v1834 = vadd.f32 %v1688, %v1760
    %v1835 = vadd.f32 %v1689, %v1829
    %v1836 = vadd.f32 %v1690, %v1831
    %v1837 = vxor.u32 %v1833, 2147483648
    %v1838 = vmul.f32 %v1837, 1.442695
    %v1839 = vpow.pop %v1838
    %v1840 = vadd.f32 %v1839, 1.0
    %v1841 = vrcp.pop %v1840
    %v1842 = vmul.f32 1.0, %v1841
    %v1843 = vxor.u32 %v1834, 2147483648
    %v1844 = vmul.f32 %v1843, 1.442695
    %v1845 = vpow.pop %v1844
    %v1846 = vadd.f32 %v1845, 1.0
    %v1847 = vrcp.pop %v1846
    %v1848 = vmul.f32 1.0, %v1847
    %v1849 = vtanh.pop %v1835
    %v1850 = vxor.u32 %v1836, 2147483648
    %v1851 = vmul.f32 %v1850, 1.442695
    %v1852 = vpow.pop %v1851
    %v1853 = vadd.f32 %v1852, 1.0
    %v1854 = vrcp.pop %v1853
    %v1855 = vmul.f32 1.0, %v1854
    %v1856 = vmul.f32 %v1848, %v1681
    %v1857 = vmul.f32 %v1842, %v1849
    %v1858 = vadd.f32 %v1856, %v1857
    %v1859 = vtanh.pop %v1858
    %v1860 = vmul.f32 %v1855, %v1859
    %1861 = vst [vmem:[#allocation2] sm:$0xff] %v1860
    %1862 = vst [vmem:[#allocation3] sm:$0xff] %v1858
    // Predicated region
    $region38: #{tpu_custom_call.1} parent=1 // pred_check
      %p1863 = pneg %p52
    $region39: #{tpu_custom_call.1} parent=1 // pred_check_branch
      %1865 = sbr.rel (%p1863) target = $region41
    $region40: #{tpu_custom_call.1} parent=1 // pred_region
      %v1866 = vld [vmem:[#allocation8] sm:$0xff]
      %v1867 = vld [vmem:[#allocation8 + $0x8] sm:$0xff]
      %v1868 = vld [vmem:[#allocation8 + $0x10] sm:$0xff]
      %v1869 = vld [vmem:[#allocation8 + $0x18] sm:$0xff]
      %v1870 = vld [vmem:[#allocation8 + $0x20] sm:$0xff]
      %v1871 = vld [vmem:[#allocation8 + $0x28] sm:$0xff]
      %v1872 = vld [vmem:[#allocation8 + $0x30] sm:$0xff]
      %v1873 = vld [vmem:[#allocation8 + $0x38] sm:$0xff]
      %v1874 = vld [vmem:[#allocation8 + $0x40] sm:$0xff]
      %v1875 = vld [vmem:[#allocation8 + $0x48] sm:$0xff]
      %v1876 = vld [vmem:[#allocation8 + $0x50] sm:$0xff]
      %v1877 = vld [vmem:[#allocation8 + $0x58] sm:$0xff]
      %v1878 = vld [vmem:[#allocation8 + $0x60] sm:$0xff]
      %v1879 = vld [vmem:[#allocation8 + $0x68] sm:$0xff]
      %v1880 = vld [vmem:[#allocation8 + $0x70] sm:$0xff]
      %v1881 = vld [vmem:[#allocation8 + $0x78] sm:$0xff]
      %v1882 = vld [vmem:[%s5] sm:$0x1]
      %v1884 = vlaneseq
      %v1885 = vshrl.u32 %v1884, 7
      %v1886 = vsub.s32 0, %v1885
      %v1887 = vrot.slane %v1882, %v1886
      %1889 = vmatprep.subr.mxu0 0.0
      %1890 = vmatpush1.msra.mxu0 %v1866
      %1891 = vmatprep.subr.mxu0 0.0
      %1892 = vmatpush1.msra.mxu0 %v1867
      %1893 = vmatprep.subr.mxu0 0.0
      %1894 = vmatpush1.msra.mxu0 %v1868
      %1895 = vmatprep.subr.mxu0 0.0
      %1896 = vmatpush1.msra.mxu0 %v1869
      %1897 = vmatprep.subr.mxu0 0.0
      %1898 = vmatpush1.msra.mxu0 %v1870
      %1899 = vmatprep.subr.mxu0 0.0
      %1900 = vmatpush1.msra.mxu0 %v1871
      %1901 = vmatprep.subr.mxu0 0.0
      %1902 = vmatpush1.msra.mxu0 %v1872
      %1903 = vmatprep.subr.mxu0 0.0
      %1904 = vmatpush1.msra.mxu0 %v1873
      %1905 = vmatprep.subr.mxu0 0.0
      %1906 = vmatpush1.msra.mxu0 %v1874
      %1907 = vmatprep.subr.mxu0 0.0
      %1908 = vmatpush1.msra.mxu0 %v1875
      %1909 = vmatprep.subr.mxu0 0.0
      %1910 = vmatpush1.msra.mxu0 %v1876
      %1911 = vmatprep.subr.mxu0 0.0
      %1912 = vmatpush1.msra.mxu0 %v1877
      %1913 = vmatprep.subr.mxu0 0.0
      %1914 = vmatpush1.msra.mxu0 %v1878
      %1915 = vmatprep.subr.mxu0 0.0
      %1916 = vmatpush1.msra.mxu0 %v1879
      %1917 = vmatprep.subr.mxu0 0.0
      %1918 = vmatpush1.msra.mxu0 %v1880
      %1919 = vmatprep.subr.mxu0 0.0
      %1920 = vmatpush1.msra.mxu0 %v1881
      %1921 = vmatprep.subr.mxu0 0.0
      %1922 = vmatpush1.msra.mxu0 0.0
      %1923 = vmatprep.subr.mxu0 0.0
      %1924 = vmatpush1.msra.mxu0 0.0
      %1925 = vmatprep.subr.mxu0 0.0
      %1926 = vmatpush1.msra.mxu0 0.0
      %1927 = vmatprep.subr.mxu0 0.0
      %1928 = vmatpush1.msra.mxu0 0.0
      %1929 = vmatprep.subr.mxu0 0.0
      %1930 = vmatpush1.msra.mxu0 0.0
      %1931 = vmatprep.subr.mxu0 0.0
      %1932 = vmatpush1.msra.mxu0 0.0
      %1933 = vmatprep.subr.mxu0 0.0
      %1934 = vmatpush1.msra.mxu0 0.0
      %1935 = vmatprep.subr.mxu0 0.0
      %1936 = vmatpush1.msra.mxu0 0.0
      %1937 = vmatprep.subr.mxu0 0.0
      %1938 = vmatpush1.msra.mxu0 0.0
      %1939 = vmatprep.subr.mxu0 0.0
      %1940 = vmatpush1.msra.mxu0 0.0
      %1941 = vmatprep.subr.mxu0 0.0
      %1942 = vmatpush1.msra.mxu0 0.0
      %1943 = vmatprep.subr.mxu0 0.0
      %1944 = vmatpush1.msra.mxu0 0.0
      %1945 = vmatprep.subr.mxu0 0.0
      %1946 = vmatpush1.msra.mxu0 0.0
      %1947 = vmatprep.subr.mxu0 0.0
      %1948 = vmatpush1.msra.mxu0 0.0
      %1949 = vmatprep.subr.mxu0 0.0
      %1950 = vmatpush1.msra.mxu0 0.0
      %1951 = vmatprep.subr.mxu0 0.0
      %1952 = vmatpush1.msra.mxu0 0.0
      %1953 = vmatprep.mubr.f32.mxu0 0.0
      %1954 = vmatmul.mubr.f32.gmra.mrb[0].mxu0 %v1860
      %v1955 = vpop.f32.mrb[0].mxu0
      %v1956 = vadd.f32 %v1887, %v1955
      %v1957 = vpop.f32.mrb[0].mxu0
      %1958 = vdwg.mxu0
      %1959 = vst [vmem:[#allocation10] sm:$0xff] %v1956
    $region41: #{tpu_custom_call.1} parent=1 // pred_fallthru
      _
    // Predicated region
    $region42: #{tpu_custom_call.1} parent=1 // pred_check
      _
    $region43: #{tpu_custom_call.1} parent=1 // pred_check_branch
      %1961 = sbr.rel (0) target = $region45
    $region44: #{tpu_custom_call.1} parent=1 // pred_region
      %s1963 = ssub.s32 128, 128
      %1964 = vsyncadd [#allocation7], %s1963
      %s1966 = sshll.u32 [#allocation10], 4
      %s1967 = int_to_ptr.vmem [resolvable:$true] %s1966
      %1969 = dma.vmem_to_hbm [thread:$0]  %s1967, 128, %s6, [#allocation7]
    $region45: #{tpu_custom_call.1} parent=1 // pred_fallthru
      _
    // Predicated region
    $region46: #{tpu_custom_call.1} parent=1 // pred_check
      _
    $region47: #{tpu_custom_call.1} parent=1 // pred_check_branch
      %1971 = sbr.rel (0) target = $region49
    $region48: #{tpu_custom_call.1} parent=1 // pred_region
      %1972 = dma.done [#allocation7], 128
    $region49: #{tpu_custom_call.1} parent=1 // pred_fallthru
      _
    %1973 = vsyncpa [#allocation6], 1
    %1974 = vsyncpa [#allocation9], 1
    %1975 = vsyncpa [#allocation7], 1

</llo_original>
